<compile_context>
chip_gen: v7x
topology: tpu7x:2x2x1
jax: 0.10.0
libtpu: 0.0.40
codegen_flags: <defaults>
</compile_context>

<pallas_src>
import functools

import jax
import jax.numpy as jnp
from jax.experimental import pallas as pl
from jax.experimental.pallas import tpu as pltpu


def _round_up(a, m):
    return (a + m - 1) // m * m


# ---------- Kernel A: big-K shifted-im2col matmul + per-channel batch statistics ----------
def _make_conv_stats_kernel(shifts, cin_p, tl):
    def kernel(x_ref, w_ref, mask_ref, y_ref, s_ref, ss_ref, patch_ref):
        # x_ref:    (Cin_p, TL + HALO)      halo'd window of the flattened padded image
        # w_ref:    (Cout, kh*kw*Cin_p)     big-K folded weight (resident)
        # mask_ref: (1, TL)                 validity mask of this tile's output columns
        # y_ref:    (Cout, TL)              conv output tile (matmul dtype)
        # s_ref/ss_ref: (Cout, 1)           per-batch sum / sum-of-squares accumulators
        # patch_ref: (kh*kw*Cin_p, TL)      VMEM im2col scratch
        t = pl.program_id(1)

        # Build the big-K operand: slab idx holds the window shifted by that tap's
        # flattened offset.  All slice starts are static; slab offsets are tile-aligned.
        for idx, sh in enumerate(shifts):
            patch_ref[idx * cin_p:(idx + 1) * cin_p, :] = x_ref[:, sh:sh + tl]

        # ONE MXU matmul per tile, f32 accumulation.
        acc = jnp.dot(w_ref[...], patch_ref[...], preferred_element_type=jnp.float32)
        y_ref[...] = acc.astype(y_ref.dtype)            # lane-dense store (bf16 by default)

        # masked per-channel partial statistics, accumulated across tiles (t is "arbitrary")
        ym = acc * mask_ref[...]
        @pl.when(t == 0)
        def _():
            s_ref[...] = jnp.zeros(s_ref.shape, jnp.float32)
            ss_ref[...] = jnp.zeros(ss_ref.shape, jnp.float32)
        s_ref[...] += jnp.sum(ym, axis=1, keepdims=True)
        ss_ref[...] += jnp.sum(ym * acc, axis=1, keepdims=True)

    return kernel


# ---------- Kernel B: fused BatchNorm affine + PReLU + crop to compact NCHW layout ----------
def _make_bn_prelu_crop_kernel(w_pad, wo, ho):
    def kernel(y_ref, scale_ref, shift_ref, alpha_ref, o_ref):
        # y_ref: (Cout, L_out) matmul dtype (flat padded layout, stride W_pad per row)
        # scale/shift: (Cout, 1) f32   alpha: SMEM (1,) f32   o_ref: (Cout, Ho*Wo) f32
        a = alpha_ref[0]
        scale = scale_ref[...]
        shift = shift_ref[...]
        # Static per-row compaction: drops the (kw-1) wrap columns of each padded row so
        # no separate XLA crop pass over the output is needed.
        # TODO(synk): switch to a fori_loop / row-tiled grid for very large Ho.
        for r in range(ho):
            z = y_ref[:, r * w_pad:r * w_pad + wo].astype(jnp.float32) * scale + shift
            o_ref[:, r * wo:(r + 1) * wo] = jnp.where(z >= 0.0, z, a * z)

    return kernel


@functools.partial(jax.jit, static_argnames=("stride", "padding", "eps", "matmul_dtype"))
def decoder_block_forward(x, convt_w, convt_b, bn_gamma, bn_beta, prelu_a,
                          *, stride=1, padding=1, eps=1e-5, matmul_dtype=jnp.bfloat16):
    """Forward pass of DecoderBlock.

    x: [B, Cin, H, W] (NCHW).  convt_w: PyTorch ConvTranspose2d weight [Cin, Cout, kh, kw].
    convt_b is accepted for interface parity but is mathematically cancelled by the
    training-mode BatchNorm (batch-mean subtraction), so it is not used in compute.
    """
    del convt_b  # cancelled exactly by BatchNorm's batch-mean subtraction
    x = x.astype(jnp.float32)
    if x.ndim < 4:
        x = x[:, None, ...]
    B, Cin, H, W = x.shape
    Cin_w, Cout, kh, kw = convt_w.shape
    assert Cin_w == Cin
    pp_h, pp_w = kh - 1 - padding, kw - 1 - padding
    assert pp_h >= 0 and pp_w >= 0, "padding > kernel_size - 1 not supported"

    # ---- glue: zero-dilate (stride) + zero-pad; transposed conv == ordinary conv over
    #      the dilated/padded input with the spatially-flipped, channel-swapped weight ----
    if stride > 1:
        Hd, Wd = (H - 1) * stride + 1, (W - 1) * stride + 1
        xd = jnp.zeros((B, Cin, Hd, Wd), x.dtype).at[:, :, ::stride, ::stride].set(x)
    else:
        Hd, Wd = H, W
        xd = x
    H_pad, W_pad = Hd + 2 * pp_h, Wd + 2 * pp_w
    Ho, Wo = H_pad - kh + 1, W_pad - kw + 1        # == (H-1)*stride - 2*padding + k
    x_pad = jnp.pad(xd, ((0, 0), (0, 0), (pp_h, pp_h), (pp_w, pp_w)))

    # ---- tiling of the flattened padded-output axis (lane-dense, multiple of 128) ----
    L_img = H_pad * W_pad
    TL_MAX = 2048
    nL = -(-L_img // TL_MAX)
    TL = _round_up(-(-L_img // nL), 128)
    L_out = nL * TL
    max_shift = (kh - 1) * W_pad + (kw - 1)
    HALO = _round_up(max_shift, 128)
    TL_H = TL + HALO
    L_src = L_out + HALO

    # channel padding so every im2col slab write is sublane-tile aligned
    sub = 8 if jnp.dtype(matmul_dtype).itemsize == 4 else 16
    Cin_p = _round_up(Cin, sub)
    K = kh * kw * Cin_p

    x_flat = jnp.pad(x_pad.reshape(B, Cin, L_img),
                     ((0, 0), (0, Cin_p - Cin), (0, L_src - L_img))).astype(matmul_dtype)
    # per-tile halo windows (static slices only; duplicates just HALO columns per tile)
    x_win = jnp.stack([x_flat[:, :, t * TL:t * TL + TL_H] for t in range(nL)],
                      axis=1).reshape(B * nL, Cin_p, TL_H)

    # big-K weight [Cout, kh*kw*Cin_p], tap-major to match the im2col slab order
    w_taps = jnp.transpose(jnp.flip(convt_w, axis=(2, 3)), (2, 3, 1, 0))
    w_taps = w_taps.reshape(kh * kw, Cout, Cin)
    w_taps = jnp.pad(w_taps, ((0, 0), (0, 0), (0, Cin_p - Cin)))
    w2 = jnp.transpose(w_taps, (1, 0, 2)).reshape(Cout, K).astype(matmul_dtype)

    # validity mask over the flattened padded output index m = ho*W_pad + wo
    midx = jnp.arange(L_out, dtype=jnp.int32)
    mask = ((midx % W_pad < Wo) & (midx // W_pad < Ho)).astype(jnp.float32)[None, :]

    shifts = tuple(ky * W_pad + kx for ky in range(kh) for kx in range(kw))
    kernel_a = _make_conv_stats_kernel(shifts, Cin_p, TL)

    itemsize = jnp.dtype(matmul_dtype).itemsize
    flops = int(2 * B * Cout * K * L_out)
    bytes_acc = int(x_win.size * itemsize + w2.size * itemsize + mask.size * 4
                    + B * Cout * L_out * itemsize + 2 * B * Cout * 4)

    y_t, psum, psumsq = pl.pallas_call(
        kernel_a,
        out_shape=(
            jax.ShapeDtypeStruct((B, Cout, L_out), matmul_dtype),
            jax.ShapeDtypeStruct((B, Cout, 1), jnp.float32),
            jax.ShapeDtypeStruct((B, Cout, 1), jnp.float32),
        ),
        grid=(B, nL),
        in_specs=[
            pl.BlockSpec((None, Cin_p, TL_H), lambda b, t: (b * nL + t, 0, 0)),
            pl.BlockSpec((Cout, K), lambda b, t: (0, 0)),
            pl.BlockSpec((1, TL), lambda b, t: (0, t)),
        ],
        out_specs=(
            pl.BlockSpec((None, Cout, TL), lambda b, t: (b, 0, t)),
            pl.BlockSpec((None, Cout, 1), lambda b, t: (b, 0, 0)),
            pl.BlockSpec((None, Cout, 1), lambda b, t: (b, 0, 0)),
        ),
        scratch_shapes=[pltpu.VMEM((K, TL), matmul_dtype)],
        compiler_params=pltpu.CompilerParams(
            dimension_semantics=("parallel", "arbitrary"),
            # Per-step blocks are small by construction; raise on v5e/v6e (128 MiB VMEM)
            # if whole-image residency is ever reintroduced.
            vmem_limit_bytes=32 * 1024 * 1024),
        cost_estimate=pl.CostEstimate(
            flops=flops, transcendentals=0, bytes_accessed=bytes_acc),
    )(x_win, w2, mask)

    # ---- glue: fold training-mode batch statistics into a per-channel affine ----
    n = jnp.float32(B * Ho * Wo)
    mean = jnp.sum(psum, axis=(0, 2)) / n                  # (Cout,)
    ex2 = jnp.sum(psumsq, axis=(0, 2)) / n
    var = jnp.maximum(ex2 - mean * mean, 0.0)              # guard E[y^2]-E[y]^2 cancellation
    scale1 = bn_gamma.astype(jnp.float32) * jax.lax.rsqrt(var + eps)
    shift1 = bn_beta.astype(jnp.float32) - mean * scale1
    scale, shift = scale1[:, None], shift1[:, None]
    alpha = jnp.reshape(prelu_a, (1,)).astype(jnp.float32)

    out_flat = pl.pallas_call(
        _make_bn_prelu_crop_kernel(W_pad, Wo, Ho),
        out_shape=jax.ShapeDtypeStruct((B, Cout, Ho * Wo), jnp.float32),
        grid=(B,),
        in_specs=[
            pl.BlockSpec((None, Cout, L_out), lambda b: (b, 0, 0)),
            pl.BlockSpec((Cout, 1), lambda b: (0, 0)),
            pl.BlockSpec((Cout, 1), lambda b: (0, 0)),
            pl.BlockSpec(memory_space=pltpu.MemorySpace.SMEM),   # PReLU alpha scalar
        ],
        out_specs=pl.BlockSpec((None, Cout, Ho * Wo), lambda b: (b, 0, 0)),
        compiler_params=pltpu.CompilerParams(
            dimension_semantics=("parallel",),
            vmem_limit_bytes=32 * 1024 * 1024),
    )(y_t, scale, shift, alpha)

    # trailing-dims reshape only (layout-preserving, no extra HBM pass)
    return out_flat.reshape(B, Cout, Ho, Wo)


def _reference_forward(x, convt_w, convt_b, bn_gamma, bn_beta, prelu_a,
                       *, stride=1, padding=1, eps=1e-5):
    """Pure-JAX f32 reference (matches PyTorch DecoderBlock in training mode)."""
    kh, kw = convt_w.shape[2], convt_w.shape[3]
    w_eq = jnp.transpose(jnp.flip(convt_w, axis=(2, 3)), (1, 0, 2, 3))  # OIHW
    y = jax.lax.conv_general_dilated(
        x, w_eq, window_strides=(1, 1),
        padding=((kh - 1 - padding, kh - 1 - padding),
                 (kw - 1 - padding, kw - 1 - padding)),
        lhs_dilation=(stride, stride),
        dimension_numbers=("NCHW", "OIHW", "NCHW"))
    y = y + convt_b[None, :, None, None]
    mean = jnp.mean(y, axis=(0, 2, 3), keepdims=True)
    var = jnp.mean((y - mean) ** 2, axis=(0, 2, 3), keepdims=True)
    z = (y - mean) / jnp.sqrt(var + eps)
    z = z * bn_gamma[None, :, None, None] + bn_beta[None, :, None, None]
    return jnp.where(z >= 0.0, z, prelu_a * z)


if __name__ == "__main__":
    B, Cin, Cout, H, W, ksz = 2, 4, 8, 16, 16, 3
    key = jax.random.PRNGKey(0)
    kx_, kw_, kb_ = jax.random.split(key, 3)

    x = jax.random.normal(kx_, (B, Cin, H, W), dtype=jnp.float32)
    convt_w = 0.1 * jax.random.normal(kw_, (Cin, Cout, ksz, ksz), dtype=jnp.float32)
    convt_b = 0.1 * jax.random.normal(kb_, (Cout,), dtype=jnp.float32)
    bn_gamma = jnp.ones((Cout,), dtype=jnp.float32)     # BatchNorm2d default weight
    bn_beta = jnp.zeros((Cout,), dtype=jnp.float32)     # BatchNorm2d default bias
    prelu_a = jnp.float32(0.25)                         # PReLU default (num_parameters=1)

    ref = _reference_forward(x, convt_w, convt_b, bn_gamma, bn_beta, prelu_a,
                             stride=1, padding=1)

    # Default path: bf16 MXU operands / bf16 intermediate y -> looser tolerance.
    out = decoder_block_forward(x, convt_w, convt_b, bn_gamma, bn_beta, prelu_a,
                                stride=1, padding=1)
    out = jax.block_until_ready(out)
    assert out.shape == (B, Cout, H, W)
    assert jnp.allclose(out, ref, atol=5e-2, rtol=5e-2), "bf16 path mismatch vs reference"

    # f32 matmul path demonstrates exactness of the algorithm itself.
    out_f32 = decoder_block_forward(x, convt_w, convt_b, bn_gamma, bn_beta, prelu_a,
                                    stride=1, padding=1, matmul_dtype=jnp.float32)
    out_f32 = jax.block_until_ready(out_f32)
    assert jnp.allclose(out_f32, ref, atol=2e-4, rtol=2e-4), "f32 path mismatch vs reference"

    print("KERNEL_OK")
</pallas_src>

<mosaic_0001>
module attributes {stable_mosaic.version = 11 : i64} {
  func.func @kernel(%arg0: i32, %arg1: i32, %arg2: memref<1x16x512xbf16, #tpu.memory_space<vmem>>, %arg3: memref<8x144xbf16, #tpu.memory_space<vmem>>, %arg4: memref<1x384xf32, #tpu.memory_space<vmem>>, %arg5: memref<1x8x384xbf16, #tpu.memory_space<vmem>>, %arg6: memref<1x8x1xf32, #tpu.memory_space<vmem>>, %arg7: memref<1x8x1xf32, #tpu.memory_space<vmem>>, %arg8: memref<144x384xbf16, #tpu.memory_space<vmem>>) attributes {dimension_semantics = [#tpu.dimension_semantics<parallel>, #tpu.dimension_semantics<arbitrary>], iteration_bounds = array<i64: 2, 1>, scalar_prefetch = 0 : i64, scratch_operands = 1 : i64, tpu.core_type = #tpu.core_type<tc>, window_params = [{transform_indices = @transform_0, window_bounds = array<i64: 1, 16, 512>}, {pipeline_mode = #tpu.pipeline_mode<synchronous>, transform_indices = @transform_1, window_bounds = array<i64: 8, 144>}, {transform_indices = @transform_2, window_bounds = array<i64: 1, 384>}, {transform_indices = @transform_3, window_bounds = array<i64: 1, 8, 384>}, {transform_indices = @transform_4, window_bounds = array<i64: 1, 8, 1>}, {transform_indices = @transform_5, window_bounds = array<i64: 1, 8, 1>}]} {
    %c0 = arith.constant 0 : index
    %c0_0 = arith.constant 0 : index
    %c0_1 = arith.constant 0 : index
    %0 = vector.load %arg2[%c0, %c0_0, %c0_1] : memref<1x16x512xbf16, #tpu.memory_space<vmem>>, vector<1x16x384xbf16>
    %1 = vector.shape_cast %0 : vector<1x16x384xbf16> to vector<16x384xbf16>
    %c0_2 = arith.constant 0 : index
    %c0_3 = arith.constant 0 : index
    %2 = vector.load %arg8[%c0_2, %c0_3] : memref<144x384xbf16, #tpu.memory_space<vmem>>, vector<16x384xbf16>
    tpu.vector_store %arg8[%c0_2, %c0_3], %1 {strides = array<i32>} : memref<144x384xbf16, #tpu.memory_space<vmem>>, vector<16x384xbf16>,
    %c0_4 = arith.constant 0 : index
    %c0_5 = arith.constant 0 : index
    %c1 = arith.constant 1 : index
    %3 = vector.load %arg2[%c0_4, %c0_5, %c1] : memref<1x16x512xbf16, #tpu.memory_space<vmem>>, vector<1x16x384xbf16>
    %4 = vector.shape_cast %3 : vector<1x16x384xbf16> to vector<16x384xbf16>
    %c16 = arith.constant 16 : index
    %c0_6 = arith.constant 0 : index
    %5 = vector.load %arg8[%c16, %c0_6] : memref<144x384xbf16, #tpu.memory_space<vmem>>, vector<16x384xbf16>
    tpu.vector_store %arg8[%c16, %c0_6], %4 {strides = array<i32>} : memref<144x384xbf16, #tpu.memory_space<vmem>>, vector<16x384xbf16>,
    %c0_7 = arith.constant 0 : index
    %c0_8 = arith.constant 0 : index
    %c2 = arith.constant 2 : index
    %6 = vector.load %arg2[%c0_7, %c0_8, %c2] : memref<1x16x512xbf16, #tpu.memory_space<vmem>>, vector<1x16x384xbf16>
    %7 = vector.shape_cast %6 : vector<1x16x384xbf16> to vector<16x384xbf16>
    %c32 = arith.constant 32 : index
    %c0_9 = arith.constant 0 : index
    %8 = vector.load %arg8[%c32, %c0_9] : memref<144x384xbf16, #tpu.memory_space<vmem>>, vector<16x384xbf16>
    tpu.vector_store %arg8[%c32, %c0_9], %7 {strides = array<i32>} : memref<144x384xbf16, #tpu.memory_space<vmem>>, vector<16x384xbf16>,
    %c0_10 = arith.constant 0 : index
    %c0_11 = arith.constant 0 : index
    %c18 = arith.constant 18 : index
    %9 = vector.load %arg2[%c0_10, %c0_11, %c18] : memref<1x16x512xbf16, #tpu.memory_space<vmem>>, vector<1x16x384xbf16>
    %10 = vector.shape_cast %9 : vector<1x16x384xbf16> to vector<16x384xbf16>
    %c48 = arith.constant 48 : index
    %c0_12 = arith.constant 0 : index
    %11 = vector.load %arg8[%c48, %c0_12] : memref<144x384xbf16, #tpu.memory_space<vmem>>, vector<16x384xbf16>
    tpu.vector_store %arg8[%c48, %c0_12], %10 {strides = array<i32>} : memref<144x384xbf16, #tpu.memory_space<vmem>>, vector<16x384xbf16>,
    %c0_13 = arith.constant 0 : index
    %c0_14 = arith.constant 0 : index
    %c19 = arith.constant 19 : index
    %12 = vector.load %arg2[%c0_13, %c0_14, %c19] : memref<1x16x512xbf16, #tpu.memory_space<vmem>>, vector<1x16x384xbf16>
    %13 = vector.shape_cast %12 : vector<1x16x384xbf16> to vector<16x384xbf16>
    %c64 = arith.constant 64 : index
    %c0_15 = arith.constant 0 : index
    %14 = vector.load %arg8[%c64, %c0_15] : memref<144x384xbf16, #tpu.memory_space<vmem>>, vector<16x384xbf16>
    tpu.vector_store %arg8[%c64, %c0_15], %13 {strides = array<i32>} : memref<144x384xbf16, #tpu.memory_space<vmem>>, vector<16x384xbf16>,
    %c0_16 = arith.constant 0 : index
    %c0_17 = arith.constant 0 : index
    %c20 = arith.constant 20 : index
    %15 = vector.load %arg2[%c0_16, %c0_17, %c20] : memref<1x16x512xbf16, #tpu.memory_space<vmem>>, vector<1x16x384xbf16>
    %16 = vector.shape_cast %15 : vector<1x16x384xbf16> to vector<16x384xbf16>
    %c80 = arith.constant 80 : index
    %c0_18 = arith.constant 0 : index
    %17 = vector.load %arg8[%c80, %c0_18] : memref<144x384xbf16, #tpu.memory_space<vmem>>, vector<16x384xbf16>
    tpu.vector_store %arg8[%c80, %c0_18], %16 {strides = array<i32>} : memref<144x384xbf16, #tpu.memory_space<vmem>>, vector<16x384xbf16>,
    %c0_19 = arith.constant 0 : index
    %c0_20 = arith.constant 0 : index
    %c36 = arith.constant 36 : index
    %18 = vector.load %arg2[%c0_19, %c0_20, %c36] : memref<1x16x512xbf16, #tpu.memory_space<vmem>>, vector<1x16x384xbf16>
    %19 = vector.shape_cast %18 : vector<1x16x384xbf16> to vector<16x384xbf16>
    %c96 = arith.constant 96 : index
    %c0_21 = arith.constant 0 : index
    %20 = vector.load %arg8[%c96, %c0_21] : memref<144x384xbf16, #tpu.memory_space<vmem>>, vector<16x384xbf16>
    tpu.vector_store %arg8[%c96, %c0_21], %19 {strides = array<i32>} : memref<144x384xbf16, #tpu.memory_space<vmem>>, vector<16x384xbf16>,
    %c0_22 = arith.constant 0 : index
    %c0_23 = arith.constant 0 : index
    %c37 = arith.constant 37 : index
    %21 = vector.load %arg2[%c0_22, %c0_23, %c37] : memref<1x16x512xbf16, #tpu.memory_space<vmem>>, vector<1x16x384xbf16>
    %22 = vector.shape_cast %21 : vector<1x16x384xbf16> to vector<16x384xbf16>
    %c112 = arith.constant 112 : index
    %c0_24 = arith.constant 0 : index
    %23 = vector.load %arg8[%c112, %c0_24] : memref<144x384xbf16, #tpu.memory_space<vmem>>, vector<16x384xbf16>
    tpu.vector_store %arg8[%c112, %c0_24], %22 {strides = array<i32>} : memref<144x384xbf16, #tpu.memory_space<vmem>>, vector<16x384xbf16>,
    %c0_25 = arith.constant 0 : index
    %c0_26 = arith.constant 0 : index
    %c38 = arith.constant 38 : index
    %24 = vector.load %arg2[%c0_25, %c0_26, %c38] : memref<1x16x512xbf16, #tpu.memory_space<vmem>>, vector<1x16x384xbf16>
    %25 = vector.shape_cast %24 : vector<1x16x384xbf16> to vector<16x384xbf16>
    %c128 = arith.constant 128 : index
    %c0_27 = arith.constant 0 : index
    %26 = vector.load %arg8[%c128, %c0_27] : memref<144x384xbf16, #tpu.memory_space<vmem>>, vector<16x384xbf16>
    tpu.vector_store %arg8[%c128, %c0_27], %25 {strides = array<i32>} : memref<144x384xbf16, #tpu.memory_space<vmem>>, vector<16x384xbf16>,
    %c0_28 = arith.constant 0 : index
    %c0_29 = arith.constant 0 : index
    %27 = vector.load %arg3[%c0_28, %c0_29] : memref<8x144xbf16, #tpu.memory_space<vmem>>, vector<8x144xbf16>
    %c0_30 = arith.constant 0 : index
    %c0_31 = arith.constant 0 : index
    %28 = vector.load %arg8[%c0_30, %c0_31] : memref<144x384xbf16, #tpu.memory_space<vmem>>, vector<144x384xbf16>
    %cst = arith.constant dense<0.000000e+00> : vector<8x384xf32>
    %29 = tpu.matmul %27, %28, %cst {dimension_numbers = #tpu.dot_dimension_numbers<[1], [0], [0], [1], [0, 0, 1, 1], [], []>} : vector<8x144xbf16>, vector<144x384xbf16>, vector<8x384xf32> -> vector<8x384xf32>
    %30 = arith.truncf %29 : vector<8x384xf32> to vector<8x384xbf16>
    %c0_32 = arith.constant 0 : index
    %c0_33 = arith.constant 0 : index
    %c0_34 = arith.constant 0 : index
    %31 = vector.load %arg5[%c0_32, %c0_33, %c0_34] : memref<1x8x384xbf16, #tpu.memory_space<vmem>>, vector<1x8x384xbf16>
    %32 = vector.shape_cast %31 : vector<1x8x384xbf16> to vector<8x384xbf16>
    %33 = vector.shape_cast %30 : vector<8x384xbf16> to vector<1x8x384xbf16>
    tpu.vector_store %arg5[%c0_32, %c0_33, %c0_34], %33 {strides = array<i32>} : memref<1x8x384xbf16, #tpu.memory_space<vmem>>, vector<1x8x384xbf16>,
    %c0_35 = arith.constant 0 : index
    %c0_36 = arith.constant 0 : index
    %34 = vector.load %arg4[%c0_35, %c0_36] : memref<1x384xf32, #tpu.memory_space<vmem>>, vector<1x384xf32>
    %35 = vector.broadcast %34 : vector<1x384xf32> to vector<8x384xf32>
    %36 = arith.mulf %29, %35 : vector<8x384xf32>
    %c0_i32 = arith.constant 0 : i32
    %37 = arith.cmpi eq, %arg1, %c0_i32 : i32
    %38 = arith.extui %37 : i1 to i32
    %c0_i32_37 = arith.constant 0 : i32
    %39 = arith.cmpi ne, %38, %c0_i32_37 : i32
    scf.if %39 {
      %cst_52 = arith.constant 0.000000e+00 : f32
      %57 = vector.broadcast %cst_52 : f32 to vector<8x1xf32>
      %c0_53 = arith.constant 0 : index
      %c0_54 = arith.constant 0 : index
      %c0_55 = arith.constant 0 : index
      %58 = vector.load %arg6[%c0_53, %c0_54, %c0_55] : memref<1x8x1xf32, #tpu.memory_space<vmem>>, vector<1x8x1xf32>
      %59 = vector.shape_cast %58 : vector<1x8x1xf32> to vector<8x1xf32>
      %60 = vector.shape_cast %57 : vector<8x1xf32> to vector<1x8x1xf32>
      tpu.vector_store %arg6[%c0_53, %c0_54, %c0_55], %60 {strides = array<i32>} : memref<1x8x1xf32, #tpu.memory_space<vmem>>, vector<1x8x1xf32>,
      %cst_56 = arith.constant 0.000000e+00 : f32
      %61 = vector.broadcast %cst_56 : f32 to vector<8x1xf32>
      %c0_57 = arith.constant 0 : index
      %c0_58 = arith.constant 0 : index
      %c0_59 = arith.constant 0 : index
      %62 = vector.load %arg7[%c0_57, %c0_58, %c0_59] : memref<1x8x1xf32, #tpu.memory_space<vmem>>, vector<1x8x1xf32>
      %63 = vector.shape_cast %62 : vector<1x8x1xf32> to vector<8x1xf32>
      %64 = vector.shape_cast %61 : vector<8x1xf32> to vector<1x8x1xf32>
      tpu.vector_store %arg7[%c0_57, %c0_58, %c0_59], %64 {strides = array<i32>} : memref<1x8x1xf32, #tpu.memory_space<vmem>>, vector<1x8x1xf32>,
    } else {
    }
    %c0_38 = arith.constant 0 : index
    %c0_39 = arith.constant 0 : index
    %c0_40 = arith.constant 0 : index
    %40 = vector.load %arg6[%c0_38, %c0_39, %c0_40] : memref<1x8x1xf32, #tpu.memory_space<vmem>>, vector<1x8x1xf32>
    %41 = vector.shape_cast %40 : vector<1x8x1xf32> to vector<8x1xf32>
    %cst_41 = arith.constant dense<0.000000e+00> : vector<8xf32>
    %42 = vector.multi_reduction <add>, %36, %cst_41 [1] : vector<8x384xf32> to vector<8xf32>
    %43 = vector.shape_cast %42 : vector<8xf32> to vector<8x1xf32>
    %44 = arith.addf %41, %43 : vector<8x1xf32>
    %c0_42 = arith.constant 0 : index
    %c0_43 = arith.constant 0 : index
    %c0_44 = arith.constant 0 : index
    %45 = vector.load %arg6[%c0_42, %c0_43, %c0_44] : memref<1x8x1xf32, #tpu.memory_space<vmem>>, vector<1x8x1xf32>
    %46 = vector.shape_cast %45 : vector<1x8x1xf32> to vector<8x1xf32>
    %47 = vector.shape_cast %44 : vector<8x1xf32> to vector<1x8x1xf32>
    tpu.vector_store %arg6[%c0_42, %c0_43, %c0_44], %47 {strides = array<i32>} : memref<1x8x1xf32, #tpu.memory_space<vmem>>, vector<1x8x1xf32>,
    %c0_45 = arith.constant 0 : index
    %c0_46 = arith.constant 0 : index
    %c0_47 = arith.constant 0 : index
    %48 = vector.load %arg7[%c0_45, %c0_46, %c0_47] : memref<1x8x1xf32, #tpu.memory_space<vmem>>, vector<1x8x1xf32>
    %49 = vector.shape_cast %48 : vector<1x8x1xf32> to vector<8x1xf32>
    %50 = arith.mulf %36, %29 : vector<8x384xf32>
    %cst_48 = arith.constant dense<0.000000e+00> : vector<8xf32>
    %51 = vector.multi_reduction <add>, %50, %cst_48 [1] : vector<8x384xf32> to vector<8xf32>
    %52 = vector.shape_cast %51 : vector<8xf32> to vector<8x1xf32>
    %53 = arith.addf %49, %52 : vector<8x1xf32>
    %c0_49 = arith.constant 0 : index
    %c0_50 = arith.constant 0 : index
    %c0_51 = arith.constant 0 : index
    %54 = vector.load %arg7[%c0_49, %c0_50, %c0_51] : memref<1x8x1xf32, #tpu.memory_space<vmem>>, vector<1x8x1xf32>
    %55 = vector.shape_cast %54 : vector<1x8x1xf32> to vector<8x1xf32>
    %56 = vector.shape_cast %53 : vector<8x1xf32> to vector<1x8x1xf32>
    tpu.vector_store %arg7[%c0_49, %c0_50, %c0_51], %56 {strides = array<i32>} : memref<1x8x1xf32, #tpu.memory_space<vmem>>, vector<1x8x1xf32>,
    return
  }
  func.func @transform_0(%arg0: i32, %arg1: i32) -> (i32, i32, i32) {
    %c1_i32 = arith.constant 1 : i32
    %0 = arith.muli %arg0, %c1_i32 : i32
    %1 = arith.addi %0, %arg1 : i32
    %c0_i32 = arith.constant 0 : i32
    %c0_i32_0 = arith.constant 0 : i32
    %c0_i32_1 = arith.constant 0 : i32
    return %1, %c0_i32, %c0_i32_0 : i32, i32, i32
  }
  func.func @transform_1(%arg0: i32, %arg1: i32) -> (i32, i32) {
    %c0_i32 = arith.constant 0 : i32
    %c0_i32_0 = arith.constant 0 : i32
    %c0_i32_1 = arith.constant 0 : i32
    return %c0_i32, %c0_i32_0 : i32, i32
  }
  func.func @transform_2(%arg0: i32, %arg1: i32) -> (i32, i32) {
    %c0_i32 = arith.constant 0 : i32
    %c0_i32_0 = arith.constant 0 : i32
    return %c0_i32, %arg1 : i32, i32
  }
  func.func @transform_3(%arg0: i32, %arg1: i32) -> (i32, i32, i32) {
    %c0_i32 = arith.constant 0 : i32
    %c0_i32_0 = arith.constant 0 : i32
    return %arg0, %c0_i32, %arg1 : i32, i32, i32
  }
  func.func @transform_4(%arg0: i32, %arg1: i32) -> (i32, i32, i32) {
    %c0_i32 = arith.constant 0 : i32
    %c0_i32_0 = arith.constant 0 : i32
    %c0_i32_1 = arith.constant 0 : i32
    return %arg0, %c0_i32, %c0_i32_0 : i32, i32, i32
  }
  func.func @transform_5(%arg0: i32, %arg1: i32) -> (i32, i32, i32) {
    %c0_i32 = arith.constant 0 : i32
    %c0_i32_0 = arith.constant 0 : i32
    %c0_i32_1 = arith.constant 0 : i32
    return %arg0, %c0_i32, %c0_i32_0 : i32, i32, i32
  }
}

module attributes {stable_mosaic.version = 11 : i64} {
  func.func @kernel(%arg0: i32, %arg1: memref<1x8x384xbf16, #tpu.memory_space<vmem>>, %arg2: memref<8x1xf32, #tpu.memory_space<vmem>>, %arg3: memref<8x1xf32, #tpu.memory_space<vmem>>, %arg4: memref<1xf32, #tpu.memory_space<smem>>, %arg5: memref<1x8x256xf32, #tpu.memory_space<vmem>>) attributes {dimension_semantics = [#tpu.dimension_semantics<parallel>], iteration_bounds = array<i64: 2>, scalar_prefetch = 0 : i64, scratch_operands = 0 : i64, tpu.core_type = #tpu.core_type<tc>, window_params = [{transform_indices = @transform_0, window_bounds = array<i64: 1, 8, 384>}, {pipeline_mode = #tpu.pipeline_mode<synchronous>, transform_indices = @transform_1, window_bounds = array<i64: 8, 1>}, {pipeline_mode = #tpu.pipeline_mode<synchronous>, transform_indices = @transform_2, window_bounds = array<i64: 8, 1>}, {transform_indices = @transform_3, window_bounds = array<i64: 1>}, {transform_indices = @transform_4, window_bounds = array<i64: 1, 8, 256>}]} {
    %c0 = arith.constant 0 : index
    %0 = memref.load %arg4[%c0] : memref<1xf32, #tpu.memory_space<smem>>
    %c0_0 = arith.constant 0 : index
    %c0_1 = arith.constant 0 : index
    %1 = vector.load %arg2[%c0_0, %c0_1] : memref<8x1xf32, #tpu.memory_space<vmem>>, vector<8x1xf32>
    %c0_2 = arith.constant 0 : index
    %c0_3 = arith.constant 0 : index
    %2 = vector.load %arg3[%c0_2, %c0_3] : memref<8x1xf32, #tpu.memory_space<vmem>>, vector<8x1xf32>
    %c0_4 = arith.constant 0 : index
    %c0_5 = arith.constant 0 : index
    %c0_6 = arith.constant 0 : index
    %3 = vector.load %arg1[%c0_4, %c0_5, %c0_6] : memref<1x8x384xbf16, #tpu.memory_space<vmem>>, vector<1x8x16xbf16>
    %4 = vector.shape_cast %3 : vector<1x8x16xbf16> to vector<8x16xbf16>
    %5 = arith.extf %4 : vector<8x16xbf16> to vector<8x16xf32>
    %6 = vector.broadcast %1 : vector<8x1xf32> to vector<8x16xf32>
    %7 = arith.mulf %5, %6 : vector<8x16xf32>
    %8 = vector.broadcast %2 : vector<8x1xf32> to vector<8x16xf32>
    %9 = arith.addf %7, %8 : vector<8x16xf32>
    %cst = arith.constant 0.000000e+00 : f32
    %10 = vector.broadcast %cst : f32 to vector<8x16xf32>
    %11 = arith.cmpf oge, %9, %10 : vector<8x16xf32>
    %12 = vector.broadcast %0 : f32 to vector<8x16xf32>
    %13 = arith.mulf %12, %9 : vector<8x16xf32>
    %14 = arith.select %11, %9, %13 : vector<8x16xi1>, vector<8x16xf32>
    %c0_7 = arith.constant 0 : index
    %c0_8 = arith.constant 0 : index
    %c0_9 = arith.constant 0 : index
    %15 = vector.load %arg5[%c0_7, %c0_8, %c0_9] : memref<1x8x256xf32, #tpu.memory_space<vmem>>, vector<1x8x16xf32>
    %16 = vector.shape_cast %15 : vector<1x8x16xf32> to vector<8x16xf32>
    %17 = vector.shape_cast %14 : vector<8x16xf32> to vector<1x8x16xf32>
    tpu.vector_store %arg5[%c0_7, %c0_8, %c0_9], %17 {strides = array<i32>} : memref<1x8x256xf32, #tpu.memory_space<vmem>>, vector<1x8x16xf32>,
    %c0_10 = arith.constant 0 : index
    %c0_11 = arith.constant 0 : index
    %c18 = arith.constant 18 : index
    %18 = vector.load %arg1[%c0_10, %c0_11, %c18] : memref<1x8x384xbf16, #tpu.memory_space<vmem>>, vector<1x8x16xbf16>
    %19 = vector.shape_cast %18 : vector<1x8x16xbf16> to vector<8x16xbf16>
    %20 = arith.extf %19 : vector<8x16xbf16> to vector<8x16xf32>
    %21 = vector.broadcast %1 : vector<8x1xf32> to vector<8x16xf32>
    %22 = arith.mulf %20, %21 : vector<8x16xf32>
    %23 = vector.broadcast %2 : vector<8x1xf32> to vector<8x16xf32>
    %24 = arith.addf %22, %23 : vector<8x16xf32>
    %cst_12 = arith.constant 0.000000e+00 : f32
    %25 = vector.broadcast %cst_12 : f32 to vector<8x16xf32>
    %26 = arith.cmpf oge, %24, %25 : vector<8x16xf32>
    %27 = vector.broadcast %0 : f32 to vector<8x16xf32>
    %28 = arith.mulf %27, %24 : vector<8x16xf32>
    %29 = arith.select %26, %24, %28 : vector<8x16xi1>, vector<8x16xf32>
    %c0_13 = arith.constant 0 : index
    %c0_14 = arith.constant 0 : index
    %c16 = arith.constant 16 : index
    %30 = vector.load %arg5[%c0_13, %c0_14, %c16] : memref<1x8x256xf32, #tpu.memory_space<vmem>>, vector<1x8x16xf32>
    %31 = vector.shape_cast %30 : vector<1x8x16xf32> to vector<8x16xf32>
    %32 = vector.shape_cast %29 : vector<8x16xf32> to vector<1x8x16xf32>
    tpu.vector_store %arg5[%c0_13, %c0_14, %c16], %32 {strides = array<i32>} : memref<1x8x256xf32, #tpu.memory_space<vmem>>, vector<1x8x16xf32>,
    %c0_15 = arith.constant 0 : index
    %c0_16 = arith.constant 0 : index
    %c36 = arith.constant 36 : index
    %33 = vector.load %arg1[%c0_15, %c0_16, %c36] : memref<1x8x384xbf16, #tpu.memory_space<vmem>>, vector<1x8x16xbf16>
    %34 = vector.shape_cast %33 : vector<1x8x16xbf16> to vector<8x16xbf16>
    %35 = arith.extf %34 : vector<8x16xbf16> to vector<8x16xf32>
    %36 = vector.broadcast %1 : vector<8x1xf32> to vector<8x16xf32>
    %37 = arith.mulf %35, %36 : vector<8x16xf32>
    %38 = vector.broadcast %2 : vector<8x1xf32> to vector<8x16xf32>
    %39 = arith.addf %37, %38 : vector<8x16xf32>
    %cst_17 = arith.constant 0.000000e+00 : f32
    %40 = vector.broadcast %cst_17 : f32 to vector<8x16xf32>
    %41 = arith.cmpf oge, %39, %40 : vector<8x16xf32>
    %42 = vector.broadcast %0 : f32 to vector<8x16xf32>
    %43 = arith.mulf %42, %39 : vector<8x16xf32>
    %44 = arith.select %41, %39, %43 : vector<8x16xi1>, vector<8x16xf32>
    %c0_18 = arith.constant 0 : index
    %c0_19 = arith.constant 0 : index
    %c32 = arith.constant 32 : index
    %45 = vector.load %arg5[%c0_18, %c0_19, %c32] : memref<1x8x256xf32, #tpu.memory_space<vmem>>, vector<1x8x16xf32>
    %46 = vector.shape_cast %45 : vector<1x8x16xf32> to vector<8x16xf32>
    %47 = vector.shape_cast %44 : vector<8x16xf32> to vector<1x8x16xf32>
    tpu.vector_store %arg5[%c0_18, %c0_19, %c32], %47 {strides = array<i32>} : memref<1x8x256xf32, #tpu.memory_space<vmem>>, vector<1x8x16xf32>,
    %c0_20 = arith.constant 0 : index
    %c0_21 = arith.constant 0 : index
    %c54 = arith.constant 54 : index
    %48 = vector.load %arg1[%c0_20, %c0_21, %c54] : memref<1x8x384xbf16, #tpu.memory_space<vmem>>, vector<1x8x16xbf16>
    %49 = vector.shape_cast %48 : vector<1x8x16xbf16> to vector<8x16xbf16>
    %50 = arith.extf %49 : vector<8x16xbf16> to vector<8x16xf32>
    %51 = vector.broadcast %1 : vector<8x1xf32> to vector<8x16xf32>
    %52 = arith.mulf %50, %51 : vector<8x16xf32>
    %53 = vector.broadcast %2 : vector<8x1xf32> to vector<8x16xf32>
    %54 = arith.addf %52, %53 : vector<8x16xf32>
    %cst_22 = arith.constant 0.000000e+00 : f32
    %55 = vector.broadcast %cst_22 : f32 to vector<8x16xf32>
    %56 = arith.cmpf oge, %54, %55 : vector<8x16xf32>
    %57 = vector.broadcast %0 : f32 to vector<8x16xf32>
    %58 = arith.mulf %57, %54 : vector<8x16xf32>
    %59 = arith.select %56, %54, %58 : vector<8x16xi1>, vector<8x16xf32>
    %c0_23 = arith.constant 0 : index
    %c0_24 = arith.constant 0 : index
    %c48 = arith.constant 48 : index
    %60 = vector.load %arg5[%c0_23, %c0_24, %c48] : memref<1x8x256xf32, #tpu.memory_space<vmem>>, vector<1x8x16xf32>
    %61 = vector.shape_cast %60 : vector<1x8x16xf32> to vector<8x16xf32>
    %62 = vector.shape_cast %59 : vector<8x16xf32> to vector<1x8x16xf32>
    tpu.vector_store %arg5[%c0_23, %c0_24, %c48], %62 {strides = array<i32>} : memref<1x8x256xf32, #tpu.memory_space<vmem>>, vector<1x8x16xf32>,
    %c0_25 = arith.constant 0 : index
    %c0_26 = arith.constant 0 : index
    %c72 = arith.constant 72 : index
    %63 = vector.load %arg1[%c0_25, %c0_26, %c72] : memref<1x8x384xbf16, #tpu.memory_space<vmem>>, vector<1x8x16xbf16>
    %64 = vector.shape_cast %63 : vector<1x8x16xbf16> to vector<8x16xbf16>
    %65 = arith.extf %64 : vector<8x16xbf16> to vector<8x16xf32>
    %66 = vector.broadcast %1 : vector<8x1xf32> to vector<8x16xf32>
    %67 = arith.mulf %65, %66 : vector<8x16xf32>
    %68 = vector.broadcast %2 : vector<8x1xf32> to vector<8x16xf32>
    %69 = arith.addf %67, %68 : vector<8x16xf32>
    %cst_27 = arith.constant 0.000000e+00 : f32
    %70 = vector.broadcast %cst_27 : f32 to vector<8x16xf32>
    %71 = arith.cmpf oge, %69, %70 : vector<8x16xf32>
    %72 = vector.broadcast %0 : f32 to vector<8x16xf32>
    %73 = arith.mulf %72, %69 : vector<8x16xf32>
    %74 = arith.select %71, %69, %73 : vector<8x16xi1>, vector<8x16xf32>
    %c0_28 = arith.constant 0 : index
    %c0_29 = arith.constant 0 : index
    %c64 = arith.constant 64 : index
    %75 = vector.load %arg5[%c0_28, %c0_29, %c64] : memref<1x8x256xf32, #tpu.memory_space<vmem>>, vector<1x8x16xf32>
    %76 = vector.shape_cast %75 : vector<1x8x16xf32> to vector<8x16xf32>
    %77 = vector.shape_cast %74 : vector<8x16xf32> to vector<1x8x16xf32>
    tpu.vector_store %arg5[%c0_28, %c0_29, %c64], %77 {strides = array<i32>} : memref<1x8x256xf32, #tpu.memory_space<vmem>>, vector<1x8x16xf32>,
    %c0_30 = arith.constant 0 : index
    %c0_31 = arith.constant 0 : index
    %c90 = arith.constant 90 : index
    %78 = vector.load %arg1[%c0_30, %c0_31, %c90] : memref<1x8x384xbf16, #tpu.memory_space<vmem>>, vector<1x8x16xbf16>
    %79 = vector.shape_cast %78 : vector<1x8x16xbf16> to vector<8x16xbf16>
    %80 = arith.extf %79 : vector<8x16xbf16> to vector<8x16xf32>
    %81 = vector.broadcast %1 : vector<8x1xf32> to vector<8x16xf32>
    %82 = arith.mulf %80, %81 : vector<8x16xf32>
    %83 = vector.broadcast %2 : vector<8x1xf32> to vector<8x16xf32>
    %84 = arith.addf %82, %83 : vector<8x16xf32>
    %cst_32 = arith.constant 0.000000e+00 : f32
    %85 = vector.broadcast %cst_32 : f32 to vector<8x16xf32>
    %86 = arith.cmpf oge, %84, %85 : vector<8x16xf32>
    %87 = vector.broadcast %0 : f32 to vector<8x16xf32>
    %88 = arith.mulf %87, %84 : vector<8x16xf32>
    %89 = arith.select %86, %84, %88 : vector<8x16xi1>, vector<8x16xf32>
    %c0_33 = arith.constant 0 : index
    %c0_34 = arith.constant 0 : index
    %c80 = arith.constant 80 : index
    %90 = vector.load %arg5[%c0_33, %c0_34, %c80] : memref<1x8x256xf32, #tpu.memory_space<vmem>>, vector<1x8x16xf32>
    %91 = vector.shape_cast %90 : vector<1x8x16xf32> to vector<8x16xf32>
    %92 = vector.shape_cast %89 : vector<8x16xf32> to vector<1x8x16xf32>
    tpu.vector_store %arg5[%c0_33, %c0_34, %c80], %92 {strides = array<i32>} : memref<1x8x256xf32, #tpu.memory_space<vmem>>, vector<1x8x16xf32>,
    %c0_35 = arith.constant 0 : index
    %c0_36 = arith.constant 0 : index
    %c108 = arith.constant 108 : index
    %93 = vector.load %arg1[%c0_35, %c0_36, %c108] : memref<1x8x384xbf16, #tpu.memory_space<vmem>>, vector<1x8x16xbf16>
    %94 = vector.shape_cast %93 : vector<1x8x16xbf16> to vector<8x16xbf16>
    %95 = arith.extf %94 : vector<8x16xbf16> to vector<8x16xf32>
    %96 = vector.broadcast %1 : vector<8x1xf32> to vector<8x16xf32>
    %97 = arith.mulf %95, %96 : vector<8x16xf32>
    %98 = vector.broadcast %2 : vector<8x1xf32> to vector<8x16xf32>
    %99 = arith.addf %97, %98 : vector<8x16xf32>
    %cst_37 = arith.constant 0.000000e+00 : f32
    %100 = vector.broadcast %cst_37 : f32 to vector<8x16xf32>
    %101 = arith.cmpf oge, %99, %100 : vector<8x16xf32>
    %102 = vector.broadcast %0 : f32 to vector<8x16xf32>
    %103 = arith.mulf %102, %99 : vector<8x16xf32>
    %104 = arith.select %101, %99, %103 : vector<8x16xi1>, vector<8x16xf32>
    %c0_38 = arith.constant 0 : index
    %c0_39 = arith.constant 0 : index
    %c96 = arith.constant 96 : index
    %105 = vector.load %arg5[%c0_38, %c0_39, %c96] : memref<1x8x256xf32, #tpu.memory_space<vmem>>, vector<1x8x16xf32>
    %106 = vector.shape_cast %105 : vector<1x8x16xf32> to vector<8x16xf32>
    %107 = vector.shape_cast %104 : vector<8x16xf32> to vector<1x8x16xf32>
    tpu.vector_store %arg5[%c0_38, %c0_39, %c96], %107 {strides = array<i32>} : memref<1x8x256xf32, #tpu.memory_space<vmem>>, vector<1x8x16xf32>,
    %c0_40 = arith.constant 0 : index
    %c0_41 = arith.constant 0 : index
    %c126 = arith.constant 126 : index
    %108 = vector.load %arg1[%c0_40, %c0_41, %c126] : memref<1x8x384xbf16, #tpu.memory_space<vmem>>, vector<1x8x16xbf16>
    %109 = vector.shape_cast %108 : vector<1x8x16xbf16> to vector<8x16xbf16>
    %110 = arith.extf %109 : vector<8x16xbf16> to vector<8x16xf32>
    %111 = vector.broadcast %1 : vector<8x1xf32> to vector<8x16xf32>
    %112 = arith.mulf %110, %111 : vector<8x16xf32>
    %113 = vector.broadcast %2 : vector<8x1xf32> to vector<8x16xf32>
    %114 = arith.addf %112, %113 : vector<8x16xf32>
    %cst_42 = arith.constant 0.000000e+00 : f32
    %115 = vector.broadcast %cst_42 : f32 to vector<8x16xf32>
    %116 = arith.cmpf oge, %114, %115 : vector<8x16xf32>
    %117 = vector.broadcast %0 : f32 to vector<8x16xf32>
    %118 = arith.mulf %117, %114 : vector<8x16xf32>
    %119 = arith.select %116, %114, %118 : vector<8x16xi1>, vector<8x16xf32>
    %c0_43 = arith.constant 0 : index
    %c0_44 = arith.constant 0 : index
    %c112 = arith.constant 112 : index
    %120 = vector.load %arg5[%c0_43, %c0_44, %c112] : memref<1x8x256xf32, #tpu.memory_space<vmem>>, vector<1x8x16xf32>
    %121 = vector.shape_cast %120 : vector<1x8x16xf32> to vector<8x16xf32>
    %122 = vector.shape_cast %119 : vector<8x16xf32> to vector<1x8x16xf32>
    tpu.vector_store %arg5[%c0_43, %c0_44, %c112], %122 {strides = array<i32>} : memref<1x8x256xf32, #tpu.memory_space<vmem>>, vector<1x8x16xf32>,
    %c0_45 = arith.constant 0 : index
    %c0_46 = arith.constant 0 : index
    %c144 = arith.constant 144 : index
    %123 = vector.load %arg1[%c0_45, %c0_46, %c144] : memref<1x8x384xbf16, #tpu.memory_space<vmem>>, vector<1x8x16xbf16>
    %124 = vector.shape_cast %123 : vector<1x8x16xbf16> to vector<8x16xbf16>
    %125 = arith.extf %124 : vector<8x16xbf16> to vector<8x16xf32>
    %126 = vector.broadcast %1 : vector<8x1xf32> to vector<8x16xf32>
    %127 = arith.mulf %125, %126 : vector<8x16xf32>
    %128 = vector.broadcast %2 : vector<8x1xf32> to vector<8x16xf32>
    %129 = arith.addf %127, %128 : vector<8x16xf32>
    %cst_47 = arith.constant 0.000000e+00 : f32
    %130 = vector.broadcast %cst_47 : f32 to vector<8x16xf32>
    %131 = arith.cmpf oge, %129, %130 : vector<8x16xf32>
    %132 = vector.broadcast %0 : f32 to vector<8x16xf32>
    %133 = arith.mulf %132, %129 : vector<8x16xf32>
    %134 = arith.select %131, %129, %133 : vector<8x16xi1>, vector<8x16xf32>
    %c0_48 = arith.constant 0 : index
    %c0_49 = arith.constant 0 : index
    %c128 = arith.constant 128 : index
    %135 = vector.load %arg5[%c0_48, %c0_49, %c128] : memref<1x8x256xf32, #tpu.memory_space<vmem>>, vector<1x8x16xf32>
    %136 = vector.shape_cast %135 : vector<1x8x16xf32> to vector<8x16xf32>
    %137 = vector.shape_cast %134 : vector<8x16xf32> to vector<1x8x16xf32>
    tpu.vector_store %arg5[%c0_48, %c0_49, %c128], %137 {strides = array<i32>} : memref<1x8x256xf32, #tpu.memory_space<vmem>>, vector<1x8x16xf32>,
    %c0_50 = arith.constant 0 : index
    %c0_51 = arith.constant 0 : index
    %c162 = arith.constant 162 : index
    %138 = vector.load %arg1[%c0_50, %c0_51, %c162] : memref<1x8x384xbf16, #tpu.memory_space<vmem>>, vector<1x8x16xbf16>
    %139 = vector.shape_cast %138 : vector<1x8x16xbf16> to vector<8x16xbf16>
    %140 = arith.extf %139 : vector<8x16xbf16> to vector<8x16xf32>
    %141 = vector.broadcast %1 : vector<8x1xf32> to vector<8x16xf32>
    %142 = arith.mulf %140, %141 : vector<8x16xf32>
    %143 = vector.broadcast %2 : vector<8x1xf32> to vector<8x16xf32>
    %144 = arith.addf %142, %143 : vector<8x16xf32>
    %cst_52 = arith.constant 0.000000e+00 : f32
    %145 = vector.broadcast %cst_52 : f32 to vector<8x16xf32>
    %146 = arith.cmpf oge, %144, %145 : vector<8x16xf32>
    %147 = vector.broadcast %0 : f32 to vector<8x16xf32>
    %148 = arith.mulf %147, %144 : vector<8x16xf32>
    %149 = arith.select %146, %144, %148 : vector<8x16xi1>, vector<8x16xf32>
    %c0_53 = arith.constant 0 : index
    %c0_54 = arith.constant 0 : index
    %c144_55 = arith.constant 144 : index
    %150 = vector.load %arg5[%c0_53, %c0_54, %c144_55] : memref<1x8x256xf32, #tpu.memory_space<vmem>>, vector<1x8x16xf32>
    %151 = vector.shape_cast %150 : vector<1x8x16xf32> to vector<8x16xf32>
    %152 = vector.shape_cast %149 : vector<8x16xf32> to vector<1x8x16xf32>
    tpu.vector_store %arg5[%c0_53, %c0_54, %c144_55], %152 {strides = array<i32>} : memref<1x8x256xf32, #tpu.memory_space<vmem>>, vector<1x8x16xf32>,
    %c0_56 = arith.constant 0 : index
    %c0_57 = arith.constant 0 : index
    %c180 = arith.constant 180 : index
    %153 = vector.load %arg1[%c0_56, %c0_57, %c180] : memref<1x8x384xbf16, #tpu.memory_space<vmem>>, vector<1x8x16xbf16>
    %154 = vector.shape_cast %153 : vector<1x8x16xbf16> to vector<8x16xbf16>
    %155 = arith.extf %154 : vector<8x16xbf16> to vector<8x16xf32>
    %156 = vector.broadcast %1 : vector<8x1xf32> to vector<8x16xf32>
    %157 = arith.mulf %155, %156 : vector<8x16xf32>
    %158 = vector.broadcast %2 : vector<8x1xf32> to vector<8x16xf32>
    %159 = arith.addf %157, %158 : vector<8x16xf32>
    %cst_58 = arith.constant 0.000000e+00 : f32
    %160 = vector.broadcast %cst_58 : f32 to vector<8x16xf32>
    %161 = arith.cmpf oge, %159, %160 : vector<8x16xf32>
    %162 = vector.broadcast %0 : f32 to vector<8x16xf32>
    %163 = arith.mulf %162, %159 : vector<8x16xf32>
    %164 = arith.select %161, %159, %163 : vector<8x16xi1>, vector<8x16xf32>
    %c0_59 = arith.constant 0 : index
    %c0_60 = arith.constant 0 : index
    %c160 = arith.constant 160 : index
    %165 = vector.load %arg5[%c0_59, %c0_60, %c160] : memref<1x8x256xf32, #tpu.memory_space<vmem>>, vector<1x8x16xf32>
    %166 = vector.shape_cast %165 : vector<1x8x16xf32> to vector<8x16xf32>
    %167 = vector.shape_cast %164 : vector<8x16xf32> to vector<1x8x16xf32>
    tpu.vector_store %arg5[%c0_59, %c0_60, %c160], %167 {strides = array<i32>} : memref<1x8x256xf32, #tpu.memory_space<vmem>>, vector<1x8x16xf32>,
    %c0_61 = arith.constant 0 : index
    %c0_62 = arith.constant 0 : index
    %c198 = arith.constant 198 : index
    %168 = vector.load %arg1[%c0_61, %c0_62, %c198] : memref<1x8x384xbf16, #tpu.memory_space<vmem>>, vector<1x8x16xbf16>
    %169 = vector.shape_cast %168 : vector<1x8x16xbf16> to vector<8x16xbf16>
    %170 = arith.extf %169 : vector<8x16xbf16> to vector<8x16xf32>
    %171 = vector.broadcast %1 : vector<8x1xf32> to vector<8x16xf32>
    %172 = arith.mulf %170, %171 : vector<8x16xf32>
    %173 = vector.broadcast %2 : vector<8x1xf32> to vector<8x16xf32>
    %174 = arith.addf %172, %173 : vector<8x16xf32>
    %cst_63 = arith.constant 0.000000e+00 : f32
    %175 = vector.broadcast %cst_63 : f32 to vector<8x16xf32>
    %176 = arith.cmpf oge, %174, %175 : vector<8x16xf32>
    %177 = vector.broadcast %0 : f32 to vector<8x16xf32>
    %178 = arith.mulf %177, %174 : vector<8x16xf32>
    %179 = arith.select %176, %174, %178 : vector<8x16xi1>, vector<8x16xf32>
    %c0_64 = arith.constant 0 : index
    %c0_65 = arith.constant 0 : index
    %c176 = arith.constant 176 : index
    %180 = vector.load %arg5[%c0_64, %c0_65, %c176] : memref<1x8x256xf32, #tpu.memory_space<vmem>>, vector<1x8x16xf32>
    %181 = vector.shape_cast %180 : vector<1x8x16xf32> to vector<8x16xf32>
    %182 = vector.shape_cast %179 : vector<8x16xf32> to vector<1x8x16xf32>
    tpu.vector_store %arg5[%c0_64, %c0_65, %c176], %182 {strides = array<i32>} : memref<1x8x256xf32, #tpu.memory_space<vmem>>, vector<1x8x16xf32>,
    %c0_66 = arith.constant 0 : index
    %c0_67 = arith.constant 0 : index
    %c216 = arith.constant 216 : index
    %183 = vector.load %arg1[%c0_66, %c0_67, %c216] : memref<1x8x384xbf16, #tpu.memory_space<vmem>>, vector<1x8x16xbf16>
    %184 = vector.shape_cast %183 : vector<1x8x16xbf16> to vector<8x16xbf16>
    %185 = arith.extf %184 : vector<8x16xbf16> to vector<8x16xf32>
    %186 = vector.broadcast %1 : vector<8x1xf32> to vector<8x16xf32>
    %187 = arith.mulf %185, %186 : vector<8x16xf32>
    %188 = vector.broadcast %2 : vector<8x1xf32> to vector<8x16xf32>
    %189 = arith.addf %187, %188 : vector<8x16xf32>
    %cst_68 = arith.constant 0.000000e+00 : f32
    %190 = vector.broadcast %cst_68 : f32 to vector<8x16xf32>
    %191 = arith.cmpf oge, %189, %190 : vector<8x16xf32>
    %192 = vector.broadcast %0 : f32 to vector<8x16xf32>
    %193 = arith.mulf %192, %189 : vector<8x16xf32>
    %194 = arith.select %191, %189, %193 : vector<8x16xi1>, vector<8x16xf32>
    %c0_69 = arith.constant 0 : index
    %c0_70 = arith.constant 0 : index
    %c192 = arith.constant 192 : index
    %195 = vector.load %arg5[%c0_69, %c0_70, %c192] : memref<1x8x256xf32, #tpu.memory_space<vmem>>, vector<1x8x16xf32>
    %196 = vector.shape_cast %195 : vector<1x8x16xf32> to vector<8x16xf32>
    %197 = vector.shape_cast %194 : vector<8x16xf32> to vector<1x8x16xf32>
    tpu.vector_store %arg5[%c0_69, %c0_70, %c192], %197 {strides = array<i32>} : memref<1x8x256xf32, #tpu.memory_space<vmem>>, vector<1x8x16xf32>,
    %c0_71 = arith.constant 0 : index
    %c0_72 = arith.constant 0 : index
    %c234 = arith.constant 234 : index
    %198 = vector.load %arg1[%c0_71, %c0_72, %c234] : memref<1x8x384xbf16, #tpu.memory_space<vmem>>, vector<1x8x16xbf16>
    %199 = vector.shape_cast %198 : vector<1x8x16xbf16> to vector<8x16xbf16>
    %200 = arith.extf %199 : vector<8x16xbf16> to vector<8x16xf32>
    %201 = vector.broadcast %1 : vector<8x1xf32> to vector<8x16xf32>
    %202 = arith.mulf %200, %201 : vector<8x16xf32>
    %203 = vector.broadcast %2 : vector<8x1xf32> to vector<8x16xf32>
    %204 = arith.addf %202, %203 : vector<8x16xf32>
    %cst_73 = arith.constant 0.000000e+00 : f32
    %205 = vector.broadcast %cst_73 : f32 to vector<8x16xf32>
    %206 = arith.cmpf oge, %204, %205 : vector<8x16xf32>
    %207 = vector.broadcast %0 : f32 to vector<8x16xf32>
    %208 = arith.mulf %207, %204 : vector<8x16xf32>
    %209 = arith.select %206, %204, %208 : vector<8x16xi1>, vector<8x16xf32>
    %c0_74 = arith.constant 0 : index
    %c0_75 = arith.constant 0 : index
    %c208 = arith.constant 208 : index
    %210 = vector.load %arg5[%c0_74, %c0_75, %c208] : memref<1x8x256xf32, #tpu.memory_space<vmem>>, vector<1x8x16xf32>
    %211 = vector.shape_cast %210 : vector<1x8x16xf32> to vector<8x16xf32>
    %212 = vector.shape_cast %209 : vector<8x16xf32> to vector<1x8x16xf32>
    tpu.vector_store %arg5[%c0_74, %c0_75, %c208], %212 {strides = array<i32>} : memref<1x8x256xf32, #tpu.memory_space<vmem>>, vector<1x8x16xf32>,
    %c0_76 = arith.constant 0 : index
    %c0_77 = arith.constant 0 : index
    %c252 = arith.constant 252 : index
    %213 = vector.load %arg1[%c0_76, %c0_77, %c252] : memref<1x8x384xbf16, #tpu.memory_space<vmem>>, vector<1x8x16xbf16>
    %214 = vector.shape_cast %213 : vector<1x8x16xbf16> to vector<8x16xbf16>
    %215 = arith.extf %214 : vector<8x16xbf16> to vector<8x16xf32>
    %216 = vector.broadcast %1 : vector<8x1xf32> to vector<8x16xf32>
    %217 = arith.mulf %215, %216 : vector<8x16xf32>
    %218 = vector.broadcast %2 : vector<8x1xf32> to vector<8x16xf32>
    %219 = arith.addf %217, %218 : vector<8x16xf32>
    %cst_78 = arith.constant 0.000000e+00 : f32
    %220 = vector.broadcast %cst_78 : f32 to vector<8x16xf32>
    %221 = arith.cmpf oge, %219, %220 : vector<8x16xf32>
    %222 = vector.broadcast %0 : f32 to vector<8x16xf32>
    %223 = arith.mulf %222, %219 : vector<8x16xf32>
    %224 = arith.select %221, %219, %223 : vector<8x16xi1>, vector<8x16xf32>
    %c0_79 = arith.constant 0 : index
    %c0_80 = arith.constant 0 : index
    %c224 = arith.constant 224 : index
    %225 = vector.load %arg5[%c0_79, %c0_80, %c224] : memref<1x8x256xf32, #tpu.memory_space<vmem>>, vector<1x8x16xf32>
    %226 = vector.shape_cast %225 : vector<1x8x16xf32> to vector<8x16xf32>
    %227 = vector.shape_cast %224 : vector<8x16xf32> to vector<1x8x16xf32>
    tpu.vector_store %arg5[%c0_79, %c0_80, %c224], %227 {strides = array<i32>} : memref<1x8x256xf32, #tpu.memory_space<vmem>>, vector<1x8x16xf32>,
    %c0_81 = arith.constant 0 : index
    %c0_82 = arith.constant 0 : index
    %c270 = arith.constant 270 : index
    %228 = vector.load %arg1[%c0_81, %c0_82, %c270] : memref<1x8x384xbf16, #tpu.memory_space<vmem>>, vector<1x8x16xbf16>
    %229 = vector.shape_cast %228 : vector<1x8x16xbf16> to vector<8x16xbf16>
    %230 = arith.extf %229 : vector<8x16xbf16> to vector<8x16xf32>
    %231 = vector.broadcast %1 : vector<8x1xf32> to vector<8x16xf32>
    %232 = arith.mulf %230, %231 : vector<8x16xf32>
    %233 = vector.broadcast %2 : vector<8x1xf32> to vector<8x16xf32>
    %234 = arith.addf %232, %233 : vector<8x16xf32>
    %cst_83 = arith.constant 0.000000e+00 : f32
    %235 = vector.broadcast %cst_83 : f32 to vector<8x16xf32>
    %236 = arith.cmpf oge, %234, %235 : vector<8x16xf32>
    %237 = vector.broadcast %0 : f32 to vector<8x16xf32>
    %238 = arith.mulf %237, %234 : vector<8x16xf32>
    %239 = arith.select %236, %234, %238 : vector<8x16xi1>, vector<8x16xf32>
    %c0_84 = arith.constant 0 : index
    %c0_85 = arith.constant 0 : index
    %c240 = arith.constant 240 : index
    %240 = vector.load %arg5[%c0_84, %c0_85, %c240] : memref<1x8x256xf32, #tpu.memory_space<vmem>>, vector<1x8x16xf32>
    %241 = vector.shape_cast %240 : vector<1x8x16xf32> to vector<8x16xf32>
    %242 = vector.shape_cast %239 : vector<8x16xf32> to vector<1x8x16xf32>
    tpu.vector_store %arg5[%c0_84, %c0_85, %c240], %242 {strides = array<i32>} : memref<1x8x256xf32, #tpu.memory_space<vmem>>, vector<1x8x16xf32>,
    return
  }
  func.func @transform_0(%arg0: i32) -> (i32, i32, i32) {
    %c0_i32 = arith.constant 0 : i32
    %c0_i32_0 = arith.constant 0 : i32
    %c0_i32_1 = arith.constant 0 : i32
    return %arg0, %c0_i32, %c0_i32_0 : i32, i32, i32
  }
  func.func @transform_1(%arg0: i32) -> (i32, i32) {
    %c0_i32 = arith.constant 0 : i32
    %c0_i32_0 = arith.constant 0 : i32
    %c0_i32_1 = arith.constant 0 : i32
    return %c0_i32, %c0_i32_0 : i32, i32
  }
  func.func @transform_2(%arg0: i32) -> (i32, i32) {
    %c0_i32 = arith.constant 0 : i32
    %c0_i32_0 = arith.constant 0 : i32
    %c0_i32_1 = arith.constant 0 : i32
    return %c0_i32, %c0_i32_0 : i32, i32
  }
  func.func @transform_3(%arg0: i32) -> i32 {
    %c0_i32 = arith.constant 0 : i32
    %c0_i32_0 = arith.constant 0 : i32
    return %c0_i32 : i32
  }
  func.func @transform_4(%arg0: i32) -> (i32, i32, i32) {
    %c0_i32 = arith.constant 0 : i32
    %c0_i32_0 = arith.constant 0 : i32
    %c0_i32_1 = arith.constant 0 : i32
    return %arg0, %c0_i32, %c0_i32_0 : i32, i32, i32
  }
}

</mosaic_0001>

<llo_original>
// kernel: decoder_block_forward.3
$region0: #{decoder_block_forward.3}
  #allocation0 [shape = 'u32[]', space=smem, size = 0x4, offset = 0x4, fixed_abs, tag = 'smem constant byte address 0x4 - core index']
  #allocation1 [shape = 'u32[144,128]{1,0:T(1,128)}', space=vmem, size = 0x12000, scoped, tag = 'internal scratch']
  #allocation2 [shape = 'f32[1]{0:T(128)S(6)}', space=smem, size = 0x200, scoped, tag = 'scoped memory for decoder_block_forward.3']
  %s0 = inlined_call_operand.vmem [shape: bf16[2,8,384], index: 0, kind: input, shape index: {}]
  %s1 = inlined_call_operand.vmem [shape: f32[8,1], index: 1, kind: input, shape index: {}]
  %s2 = inlined_call_operand.vmem [shape: f32[8,1], index: 2, kind: input, shape index: {}]
  %s3 = inlined_call_operand.<no memory space> [shape: f32[1], index: 3, kind: input, shape index: {}]
  %s4 = inlined_call_operand.vmem [shape: f32[2,8,256], index: 4, kind: output, shape index: {}]
  %s5 = sld [smem:[#allocation0]]
  $region49: #{decoder_block_forward.3} parent=0
    _
  %s7 = ssub.s32 1, %s5
  %s8 = scalar_select 0, %s7, %s5
  %9 = sst [smem:[#allocation2]] %s3
  loop: start=0, step=1, limit=4
  $region2: #{decoder_block_forward.3} parent=0 // loop_pre_header
    _
  $region3: #{decoder_block_forward.3} parent=0 // loop_header
    %s11 = sphi 0, %s15
    %p12 = scmp.ge.s32.totalorder %s11, 4
    %s21 = sphi 0, %s23
    %s24 = sphi 0, %s21
    %s25 = sphi 0, %s24
    %s41 = sphi 0, %s25
    %s45 = sphi 0, %s45
    %s47 = sphi 0, %s45
    %s48 = sphi 0, %s47
    %s62 = sphi 0, %s48
    %s66 = sphi 0, %s66
    %s68 = sphi 0, %s66
    %s69 = sphi 0, %s68
    %s83 = sphi 0, %s69
    %s87 = sphi 0, %s87
    %s89 = sphi 0, %s87
    %s90 = sphi 0, %s89
    %s104 = sphi 0, %s90
    %s110 = sphi 0, %s112
    %s113 = sphi 0, %s110
    %s114 = sphi 0, %s113
    %s130 = sphi 0, %s114
  $region4: #{decoder_block_forward.3} parent=0 // loop_header_branch
    %14 = sbr.rel (%p12) target = $region8
  $region5: #{decoder_block_forward.3} parent=0 // loop_body
    %s16 = ssub.s32 %s11, 1
    %s17 = ssub.s32 %s11, 2
    %s18 = sadd.s32 %s11, 1
    %s19 = ssub.s32 %s11, %s18
    %p20 = scmp.eq.s32.totalorder %s19, 0
    %s22 = sadd.s32 %s21, 1
    %s23 = scalar_select %p20, %s21, %s22
    %p26 = pneg %p20
    %p27 = scmp.eq.s32.totalorder %s11, 1
    %p28 = por %p26, %p27
    %p29 = scmp.ne.s32.totalorder %s21, %s24
    %p30 = scmp.eq.s32.totalorder %s11, 0
    %p31 = por %p29, %p30
    %p32 = scmp.ne.s32.totalorder %s21, %s24
    %p33 = scmp.eq.s32.totalorder %s16, 1
    %p34 = por %p32, %p33
    %p35 = scmp.ne.s32.totalorder %s24, %s25
    %p36 = scmp.eq.s32.totalorder %s16, 0
    %p37 = por %p35, %p36
    %p38 = scmp.ne.s32.totalorder %s24, %s25
    %p39 = scmp.eq.s32.totalorder %s17, 1
    %p40 = por %p38, %p39
    %p42 = scmp.ne.s32.totalorder %s25, %s41
    %p43 = scmp.eq.s32.totalorder %s17, 0
    %p44 = por %p42, %p43
    %s46 = sadd.s32 %s45, 1
    %p49 = scmp.eq.s32.totalorder %s11, 1
    %p50 = scmp.ne.s32.totalorder %s45, %s47
    %p51 = scmp.eq.s32.totalorder %s11, 0
    %p52 = por %p50, %p51
    %p53 = scmp.ne.s32.totalorder %s45, %s47
    %p54 = scmp.eq.s32.totalorder %s16, 1
    %p55 = por %p53, %p54
    %p56 = scmp.ne.s32.totalorder %s47, %s48
    %p57 = scmp.eq.s32.totalorder %s16, 0
    %p58 = por %p56, %p57
    %p59 = scmp.ne.s32.totalorder %s47, %s48
    %p60 = scmp.eq.s32.totalorder %s17, 1
    %p61 = por %p59, %p60
    %p63 = scmp.ne.s32.totalorder %s48, %s62
    %p64 = scmp.eq.s32.totalorder %s17, 0
    %p65 = por %p63, %p64
    %s67 = sadd.s32 %s66, 1
    %p70 = scmp.eq.s32.totalorder %s11, 1
    %p71 = scmp.ne.s32.totalorder %s66, %s68
    %p72 = scmp.eq.s32.totalorder %s11, 0
    %p73 = por %p71, %p72
    %p74 = scmp.ne.s32.totalorder %s66, %s68
    %p75 = scmp.eq.s32.totalorder %s16, 1
    %p76 = por %p74, %p75
    %p77 = scmp.ne.s32.totalorder %s68, %s69
    %p78 = scmp.eq.s32.totalorder %s16, 0
    %p79 = por %p77, %p78
    %p80 = scmp.ne.s32.totalorder %s68, %s69
    %p81 = scmp.eq.s32.totalorder %s17, 1
    %p82 = por %p80, %p81
    %p84 = scmp.ne.s32.totalorder %s69, %s83
    %p85 = scmp.eq.s32.totalorder %s17, 0
    %p86 = por %p84, %p85
    %s88 = sadd.s32 %s87, 1
    %p91 = scmp.eq.s32.totalorder %s11, 1
    %p92 = scmp.ne.s32.totalorder %s87, %s89
    %p93 = scmp.eq.s32.totalorder %s11, 0
    %p94 = por %p92, %p93
    %p95 = scmp.ne.s32.totalorder %s87, %s89
    %p96 = scmp.eq.s32.totalorder %s16, 1
    %p97 = por %p95, %p96
    %p98 = scmp.ne.s32.totalorder %s89, %s90
    %p99 = scmp.eq.s32.totalorder %s16, 0
    %p100 = por %p98, %p99
    %p101 = scmp.ne.s32.totalorder %s89, %s90
    %p102 = scmp.eq.s32.totalorder %s17, 1
    %p103 = por %p101, %p102
    %p105 = scmp.ne.s32.totalorder %s90, %s104
    %p106 = scmp.eq.s32.totalorder %s17, 0
    %p107 = por %p105, %p106
    %s108 = ssub.s32 %s11, %s18
    %p109 = scmp.eq.s32.totalorder %s108, 0
    %s111 = sadd.s32 %s110, 1
    %s112 = scalar_select %p109, %s110, %s111
    %p115 = pneg %p109
    %p116 = scmp.eq.s32.totalorder %s11, 1
    %p117 = por %p115, %p116
    %p118 = scmp.ne.s32.totalorder %s110, %s113
    %p119 = scmp.eq.s32.totalorder %s11, 0
    %p120 = por %p118, %p119
    %p121 = scmp.ne.s32.totalorder %s110, %s113
    %p122 = scmp.eq.s32.totalorder %s16, 1
    %p123 = por %p121, %p122
    %p124 = scmp.ne.s32.totalorder %s113, %s114
    %p125 = scmp.eq.s32.totalorder %s16, 0
    %p126 = por %p124, %p125
    %p127 = scmp.ne.s32.totalorder %s113, %s114
    %p128 = scmp.eq.s32.totalorder %s17, 1
    %p129 = por %p127, %p128
    %p131 = scmp.ne.s32.totalorder %s114, %s130
    %p132 = scmp.eq.s32.totalorder %s17, 0
    %p133 = por %p131, %p132
    %p134 = scmp.le.s32.totalorder 1, %s11
    %p135 = scmp.lt.s32.totalorder %s11, 3
    %p136 = pnand %p134, %p135
    %p137 = pneg %p136
    // Predicated region
    $region9: #{decoder_block_forward.3} parent=5 // pred_check
      _
    $region10: #{decoder_block_forward.3} parent=5 // pred_check_branch
      %139 = sbr.rel (%p136) target = $region12
    $region11: #{decoder_block_forward.3} parent=5 // pred_region
      %s140 = ssub.s32 %s11, 1
      // Predicated region
      $region13: #{decoder_block_forward.3} parent=11 // pred_check
        %p141 = pneg %p58
      $region14: #{decoder_block_forward.3} parent=11 // pred_check_branch
        %143 = sbr.rel (%p141) target = $region16
      $region15: #{decoder_block_forward.3} parent=11 // pred_region
        _
      $region16: #{decoder_block_forward.3} parent=11 // pred_fallthru
        _
      // Predicated region
      $region17: #{decoder_block_forward.3} parent=11 // pred_check
        %p144 = pneg %p79
      $region18: #{decoder_block_forward.3} parent=11 // pred_check_branch
        %146 = sbr.rel (%p144) target = $region20
      $region19: #{decoder_block_forward.3} parent=11 // pred_region
        _
      $region20: #{decoder_block_forward.3} parent=11 // pred_fallthru
        _
      // Predicated region
      $region21: #{decoder_block_forward.3} parent=11 // pred_check
        %p147 = pneg %p100
      $region22: #{decoder_block_forward.3} parent=11 // pred_check_branch
        %149 = sbr.rel (%p147) target = $region24
      $region23: #{decoder_block_forward.3} parent=11 // pred_region
        _
      $region24: #{decoder_block_forward.3} parent=11 // pred_fallthru
        _
    $region12: #{decoder_block_forward.3} parent=5 // pred_fallthru
      _
    %p150 = scmp.lt.s32.totalorder %s11, 2
    // Predicated region
    $region25: #{decoder_block_forward.3} parent=5 // pred_check
      %p151 = pneg %p150
    $region26: #{decoder_block_forward.3} parent=5 // pred_check_branch
      %153 = sbr.rel (%p151) target = $region28
    $region27: #{decoder_block_forward.3} parent=5 // pred_region
      // Predicated region
      $region29: #{decoder_block_forward.3} parent=27 // pred_check
        %p154 = pneg %p31
      $region30: #{decoder_block_forward.3} parent=27 // pred_check_branch
        %156 = sbr.rel (%p154) target = $region32
      $region31: #{decoder_block_forward.3} parent=27 // pred_region
        %p157 = scmp.lt.s32.totalorder %s11, 1
        %s158 = scalar_select %p157, %s11, 1
        %s159 = smul.addr %s158, 3
        %s160 = smul.addr %s159, 4
        %s161 = scalar_lea.vmem %s0, %s160
      $region32: #{decoder_block_forward.3} parent=27 // pred_fallthru
        _
    $region28: #{decoder_block_forward.3} parent=5 // pred_fallthru
      _
    %p162 = scmp.le.s32.totalorder 1, %s11
    %p163 = scmp.lt.s32.totalorder %s11, 3
    %p164 = pnand %p162, %p163
    %p165 = pneg %p164
    // Predicated region
    $region33: #{decoder_block_forward.3} parent=5 // pred_check
      _
    $region34: #{decoder_block_forward.3} parent=5 // pred_check_branch
      %167 = sbr.rel (%p164) target = $region36
    $region35: #{decoder_block_forward.3} parent=5 // pred_region
      %s168 = ssub.s32 %s11, 1
      %p169 = scmp.lt.s32.totalorder %s16, 1
      %s170 = scalar_select %p169, %s16, 1
      %s171 = smul.addr %s170, 3
      %s172 = smul.addr %s171, 4
      %s173 = scalar_lea.vmem %s0, %s172
      %p174 = pneg %p37
      %p175 = pneg %p34
      %p176 = pneg %p58
      %p177 = pneg %p55
      %p178 = pneg %p79
      %p179 = pneg %p76
      %p180 = pneg %p100
      %p181 = pneg %p97
      %p182 = pneg %p126
      %p183 = pneg %p123
      %p184 = scmp.lt.s32.totalorder %s16, 1
      %s185 = scalar_select %p184, %s16, 1
      %s186 = smul.addr %s185, 2
      %s187 = smul.addr %s186, 8
      %s188 = scalar_lea.vmem %s4, %s187
      %p189 = scmp.lt.s32.totalorder %s16, 1
      %s190 = scalar_select %p189, %s16, 1
      %s191 = smul.addr %s190, 3
      %s192 = smul.addr %s191, 4
      %s193 = scalar_lea.vmem %s0, %s192
      %p194 = scmp.lt.s32.totalorder %s16, 1
      %s195 = scalar_select %p194, %s16, 1
      %s196 = smul.addr %s195, 2
      %s197 = smul.addr %s196, 8
      %s198 = scalar_lea.vmem %s4, %s197
      %s199 = sld [smem:[#allocation2]]
      %v200 = vld [vmem:[%s1] sm:$0xff]
      %v201 = vld [vmem:[%s2] sm:$0xff]
      %v202 = vld [vmem:[%s193] sm:$0xf]
      %v203 = vunpack.c.l.bf16 %v202
      %205 = vset.pattern.permute.xlu0 0
      %206 = vperm.xlu0 %205, %v200
      %v207 = vpop.permute.xlu0 %206
      %v209 = vmul.f32 %v203, %v207
      %211 = vset.pattern.permute.xlu0 0
      %212 = vperm.xlu0 %211, %v201
      %v213 = vpop.permute.xlu0 %212
      %v215 = vadd.f32 %v209, %v213
      %vm216 = vcmp.ge.f32.partialorder %v215, 0.0
      %v217 = vstv %s199
      %v218 = vmul.f32 %v217, %v215
      %v219 = vsel %vm216, %v215, %v218
      %vm220 = vcmask 130048
      %221 = vst.msk [vmem:[%s198] sm:$0xff] %vm220, %v219
      %v222 = vld [vmem:[%s193] sm:$0xf]
      %v223 = vunpack.c.l.bf16 %v222
      %v224 = vmul.f32 %v223, %v207
      %v225 = vadd.f32 %v224, %v213
      %vm226 = vcmp.ge.f32.partialorder %v225, 0.0
      %v227 = vmul.f32 %v217, %v225
      %v228 = vsel %vm226, %v225, %v227
      %230 = vrot.lane.b32.xlu0 %v228, 126
      %v231 = vpop.permute.xlu0 %230
      %vm233 = vcmask 261248
      %234 = vst.msk [vmem:[%s198] sm:$0xff] %vm233, %v231
      %v235 = vld [vmem:[%s193] sm:$0xf]
      %v236 = vunpack.c.l.bf16 %v235
      %v237 = vmul.f32 %v236, %v207
      %v238 = vadd.f32 %v237, %v213
      %vm239 = vcmp.ge.f32.partialorder %v238, 0.0
      %v240 = vmul.f32 %v217, %v238
      %v241 = vsel %vm239, %v238, %v240
      %243 = vrot.lane.b32.xlu0 %v241, 124
      %v244 = vpop.permute.xlu0 %243
      %vm246 = vcmask 392448
      %247 = vst.msk [vmem:[%s198] sm:$0xff] %vm246, %v244
      %v248 = vld [vmem:[%s193] sm:$0xf]
      %v249 = vunpack.c.l.bf16 %v248
      %v250 = vmul.f32 %v249, %v207
      %v251 = vadd.f32 %v250, %v213
      %vm252 = vcmp.ge.f32.partialorder %v251, 0.0
      %v253 = vmul.f32 %v217, %v251
      %v254 = vsel %vm252, %v251, %v253
      %256 = vrot.lane.b32.xlu0 %v254, 122
      %v257 = vpop.permute.xlu0 %256
      %vm259 = vcmask 523648
      %260 = vst.msk [vmem:[%s198] sm:$0xff] %vm259, %v257
      %v261 = vld [vmem:[%s193] sm:$0xf]
      %v262 = vunpack.c.l.bf16 %v261
      %v263 = vmul.f32 %v262, %v207
      %v264 = vadd.f32 %v263, %v213
      %vm265 = vcmp.ge.f32.partialorder %v264, 0.0
      %v266 = vmul.f32 %v217, %v264
      %v267 = vsel %vm265, %v264, %v266
      %269 = vrot.lane.b32.xlu0 %v267, 120
      %v270 = vpop.permute.xlu0 %269
      %vm272 = vcmask 654848
      %273 = vst.msk [vmem:[%s198] sm:$0xff] %vm272, %v270
      %v274 = vld [vmem:[%s193] sm:$0xf]
      %v275 = vunpack.c.l.bf16 %v274
      %v276 = vmul.f32 %v275, %v207
      %v277 = vadd.f32 %v276, %v213
      %vm278 = vcmp.ge.f32.partialorder %v277, 0.0
      %v279 = vmul.f32 %v217, %v277
      %v280 = vsel %vm278, %v277, %v279
      %282 = vrot.lane.b32.xlu0 %v280, 118
      %v283 = vpop.permute.xlu0 %282
      %vm285 = vcmask 786048
      %286 = vst.msk [vmem:[%s198] sm:$0xff] %vm285, %v283
      %v287 = vld [vmem:[%s193] sm:$0xf]
      %v288 = vunpack.c.l.bf16 %v287
      %v289 = vmul.f32 %v288, %v207
      %v290 = vadd.f32 %v289, %v213
      %vm291 = vcmp.ge.f32.partialorder %v290, 0.0
      %v292 = vmul.f32 %v217, %v290
      %v293 = vsel %vm291, %v290, %v292
      %295 = vrot.lane.b32.xlu0 %v293, 116
      %v296 = vpop.permute.xlu0 %295
      %vm298 = vcmask 917248
      %299 = vst.msk [vmem:[%s198] sm:$0xff] %vm298, %v296
      %v300 = vld [vmem:[%s193] sm:$0xff]
      %v301 = vunpack.c.l.bf16 %v300
      %v302 = vunpack.c.h.bf16 %v300
      %v303 = vmul.f32 %v301, %v207
      %v304 = vmul.f32 %v302, %v207
      %v305 = vadd.f32 %v303, %v213
      %v306 = vadd.f32 %v304, %v213
      %vm307 = vcmp.ge.f32.partialorder %v305, 0.0
      %vm308 = vcmp.ge.f32.partialorder %v306, 0.0
      %v309 = vmul.f32 %v217, %v305
      %v310 = vmul.f32 %v217, %v306
      %v311 = vsel %vm307, %v305, %v309
      %v312 = vsel %vm308, %v306, %v310
      %315 = vrot.lane.b32.xlu0 %v311, 114
      %v316 = vpop.permute.xlu0 %315
      %317 = vrot.lane.b32.xlu0 %v312, 114
      %v318 = vpop.permute.xlu0 %317
      %vm319 = vcmask 932864
      %v320 = vsel %vm319, %v316, %v318
      %vm322 = vcmask 1048448
      %323 = vst.msk [vmem:[%s198] sm:$0xff] %vm322, %v320
      %v324 = vld [vmem:[%s193 + $0x4] sm:$0xf]
      %v325 = vunpack.c.l.bf16 %v324
      %v326 = vmul.f32 %v325, %v207
      %v327 = vadd.f32 %v326, %v213
      %vm328 = vcmp.ge.f32.partialorder %v327, 0.0
      %v329 = vmul.f32 %v217, %v327
      %v330 = vsel %vm328, %v327, %v329
      %332 = vrot.lane.b32.xlu0 %v330, 112
      %v333 = vpop.permute.xlu0 %332
      %335 = vst.msk [vmem:[%s198 + $0x8] sm:$0xff] %vm220, %v333
      %v336 = vld [vmem:[%s193 + $0x4] sm:$0xf]
      %v337 = vunpack.c.l.bf16 %v336
      %v338 = vmul.f32 %v337, %v207
      %v339 = vadd.f32 %v338, %v213
      %vm340 = vcmp.ge.f32.partialorder %v339, 0.0
      %v341 = vmul.f32 %v217, %v339
      %v342 = vsel %vm340, %v339, %v341
      %344 = vrot.lane.b32.xlu0 %v342, 110
      %v345 = vpop.permute.xlu0 %344
      %347 = vst.msk [vmem:[%s198 + $0x8] sm:$0xff] %vm233, %v345
      %v348 = vld [vmem:[%s193 + $0x4] sm:$0xf]
      %v349 = vunpack.c.l.bf16 %v348
      %v350 = vmul.f32 %v349, %v207
      %v351 = vadd.f32 %v350, %v213
      %vm352 = vcmp.ge.f32.partialorder %v351, 0.0
      %v353 = vmul.f32 %v217, %v351
      %v354 = vsel %vm352, %v351, %v353
      %356 = vrot.lane.b32.xlu0 %v354, 108
      %v357 = vpop.permute.xlu0 %356
      %359 = vst.msk [vmem:[%s198 + $0x8] sm:$0xff] %vm246, %v357
      %v360 = vld [vmem:[%s193 + $0x4] sm:$0xf]
      %v361 = vunpack.c.l.bf16 %v360
      %v362 = vmul.f32 %v361, %v207
      %v363 = vadd.f32 %v362, %v213
      %vm364 = vcmp.ge.f32.partialorder %v363, 0.0
      %v365 = vmul.f32 %v217, %v363
      %v366 = vsel %vm364, %v363, %v365
      %368 = vrot.lane.b32.xlu0 %v366, 106
      %v369 = vpop.permute.xlu0 %368
      %371 = vst.msk [vmem:[%s198 + $0x8] sm:$0xff] %vm259, %v369
      %v372 = vld [vmem:[%s193 + $0x4] sm:$0xf]
      %v373 = vunpack.c.l.bf16 %v372
      %v374 = vmul.f32 %v373, %v207
      %v375 = vadd.f32 %v374, %v213
      %vm376 = vcmp.ge.f32.partialorder %v375, 0.0
      %v377 = vmul.f32 %v217, %v375
      %v378 = vsel %vm376, %v375, %v377
      %380 = vrot.lane.b32.xlu0 %v378, 104
      %v381 = vpop.permute.xlu0 %380
      %383 = vst.msk [vmem:[%s198 + $0x8] sm:$0xff] %vm272, %v381
      %v384 = vld [vmem:[%s193 + $0x4] sm:$0xf]
      %v385 = vunpack.c.l.bf16 %v384
      %v386 = vmul.f32 %v385, %v207
      %v387 = vadd.f32 %v386, %v213
      %vm388 = vcmp.ge.f32.partialorder %v387, 0.0
      %v389 = vmul.f32 %v217, %v387
      %v390 = vsel %vm388, %v387, %v389
      %392 = vrot.lane.b32.xlu0 %v390, 102
      %v393 = vpop.permute.xlu0 %392
      %395 = vst.msk [vmem:[%s198 + $0x8] sm:$0xff] %vm285, %v393
      %v396 = vld [vmem:[%s193 + $0x4] sm:$0xff]
      %v397 = vunpack.c.l.bf16 %v396
      %v398 = vunpack.c.h.bf16 %v396
      %v399 = vmul.f32 %v397, %v207
      %v400 = vmul.f32 %v398, %v207
      %v401 = vadd.f32 %v399, %v213
      %v402 = vadd.f32 %v400, %v213
      %vm403 = vcmp.ge.f32.partialorder %v401, 0.0
      %vm404 = vcmp.ge.f32.partialorder %v402, 0.0
      %v405 = vmul.f32 %v217, %v401
      %v406 = vmul.f32 %v217, %v402
      %v407 = vsel %vm403, %v401, %v405
      %v408 = vsel %vm404, %v402, %v406
      %411 = vrot.lane.b32.xlu0 %v407, 100
      %v412 = vpop.permute.xlu0 %411
      %413 = vrot.lane.b32.xlu0 %v408, 100
      %v414 = vpop.permute.xlu0 %413
      %vm415 = vcmask 818176
      %v416 = vsel %vm415, %v412, %v414
      %418 = vst.msk [vmem:[%s198 + $0x8] sm:$0xff] %vm298, %v416
      %v419 = vld [vmem:[%s193 + $0x8] sm:$0xf]
      %v420 = vunpack.c.l.bf16 %v419
      %v421 = vmul.f32 %v420, %v207
      %v422 = vadd.f32 %v421, %v213
      %vm423 = vcmp.ge.f32.partialorder %v422, 0.0
      %v424 = vmul.f32 %v217, %v422
      %v425 = vsel %vm423, %v422, %v424
      %427 = vrot.lane.b32.xlu0 %v425, 98
      %v428 = vpop.permute.xlu0 %427
      %430 = vst.msk [vmem:[%s198 + $0x8] sm:$0xff] %vm322, %v428
      %p431 = scmp.lt.s32.totalorder %s16, 1
      %s432 = scalar_select %p431, %s16, 1
      %s433 = smul.addr %s432, 2
      %s434 = smul.addr %s433, 8
      %s435 = scalar_lea.vmem %s4, %s434
      // Predicated region
      $region37: #{decoder_block_forward.3} parent=35 // pred_check
        %p436 = pneg %p123
      $region38: #{decoder_block_forward.3} parent=35 // pred_check_branch
        %438 = sbr.rel (%p436) target = $region40
      $region39: #{decoder_block_forward.3} parent=35 // pred_region
        _
      $region40: #{decoder_block_forward.3} parent=35 // pred_fallthru
        _
    $region36: #{decoder_block_forward.3} parent=5 // pred_fallthru
      _
    %p439 = scmp.le.s32.totalorder 2, %s11
    // Predicated region
    $region41: #{decoder_block_forward.3} parent=5 // pred_check
      %p440 = pneg %p439
    $region42: #{decoder_block_forward.3} parent=5 // pred_check_branch
      %442 = sbr.rel (%p440) target = $region44
    $region43: #{decoder_block_forward.3} parent=5 // pred_region
      %s443 = ssub.s32 %s11, 2
      // Predicated region
      $region45: #{decoder_block_forward.3} parent=43 // pred_check
        %p444 = pneg %p129
      $region46: #{decoder_block_forward.3} parent=43 // pred_check_branch
        %446 = sbr.rel (%p444) target = $region48
      $region47: #{decoder_block_forward.3} parent=43 // pred_region
        %p447 = scmp.lt.s32.totalorder %s17, 1
        %s448 = scalar_select %p447, %s17, 1
        %s449 = smul.addr %s448, 2
        %s450 = smul.addr %s449, 8
        %s451 = scalar_lea.vmem %s4, %s450
      $region48: #{decoder_block_forward.3} parent=43 // pred_fallthru
        _
    $region44: #{decoder_block_forward.3} parent=5 // pred_fallthru
      _
  $region6: #{decoder_block_forward.3} parent=0 // loop_footer
    %s15 = sadd.s32 1, %s11
  $region7: #{decoder_block_forward.3} parent=0 // loop_footer_branch
    %10 = sbr.rel target = $region3
  $region8: #{decoder_block_forward.3} parent=0 // loop_exit
    _

// kernel: decoder_block_forward.2
$region0: #{decoder_block_forward.2}
  #allocation0 [shape = 'u32[]', space=smem, size = 0x4, offset = 0x4, fixed_abs, tag = 'smem constant byte address 0x4 - core index']
  #allocation1 [shape = 'u32[144,128]{1,0:T(1,128)}', space=vmem, size = 0x12000, scoped, tag = 'internal scratch']
  #allocation2 [shape = 'bf16[144,384]{1,0:T(16,128)(2,1)}', space=vmem, size = 0x1b000, scoped, tag = 'scratch operand']
  %s0 = inlined_call_operand.vmem [shape: bf16[2,16,512], index: 0, kind: input, shape index: {}]
  %s1 = inlined_call_operand.vmem [shape: bf16[8,144], index: 1, kind: input, shape index: {}]
  %s2 = inlined_call_operand.vmem [shape: f32[1,384], index: 2, kind: input, shape index: {}]
  %s3 = inlined_call_operand.vmem [shape: bf16[2,8,384], index: 3, kind: output, shape index: {0}]
  %s4 = inlined_call_operand.vmem [shape: f32[2,8,1], index: 4, kind: output, shape index: {1}]
  %s5 = inlined_call_operand.vmem [shape: f32[2,8,1], index: 5, kind: output, shape index: {2}]
  %6 = xla_tuple %s3, %s4, %s5
  %s7 = sld [smem:[#allocation0]]
  $region65: #{decoder_block_forward.2} parent=0
    _
  %s9 = ssub.s32 1, %s7
  %s10 = scalar_select 0, %s9, %s7
  loop: start=0, step=1, limit=4
  $region2: #{decoder_block_forward.2} parent=0 // loop_pre_header
    _
  $region3: #{decoder_block_forward.2} parent=0 // loop_header
    %s12 = sphi 0, %s16
    %p13 = scmp.ge.s32.totalorder %s12, 4
    %s19 = sphi 0, %s31
    %s20 = sphi 0, %s27
    %s21 = sphi 0, %s19
    %s22 = sphi 0, %s20
    %s23 = sphi 0, %s21
    %s24 = sphi 0, %s22
    %s36 = sphi 0, %s38
    %s39 = sphi 0, %s36
    %s40 = sphi 0, %s39
    %s56 = sphi 0, %s40
    %s60 = sphi 0, %s60
    %s62 = sphi 0, %s60
    %s63 = sphi 0, %s62
    %s77 = sphi 0, %s63
    %s83 = sphi 0, %s85
    %s86 = sphi 0, %s83
    %s87 = sphi 0, %s86
    %s103 = sphi 0, %s87
    %s111 = sphi 0, %s113
    %s114 = sphi 0, %s111
    %s115 = sphi 0, %s114
    %s131 = sphi 0, %s115
    %s137 = sphi 0, %s139
    %s140 = sphi 0, %s137
    %s141 = sphi 0, %s140
    %s157 = sphi 0, %s141
    %s163 = sphi 0, %s165
    %s166 = sphi 0, %s163
    %s167 = sphi 0, %s166
    %s183 = sphi 0, %s167
  $region4: #{decoder_block_forward.2} parent=0 // loop_header_branch
    %15 = sbr.rel (%p13) target = $region8
  $region5: #{decoder_block_forward.2} parent=0 // loop_body
    %s17 = ssub.s32 %s12, 1
    %s18 = ssub.s32 %s12, 2
    %s25 = sadd.s32 1, %s20
    %p26 = scmp.ge.s32.totalorder %s25, 1
    %s27 = scalar_select %p26, 0, %s25
    %s28 = sadd.s32 1, %s19
    %s29 = scalar_select %p26, %s28, %s19
    %p30 = scmp.ge.s32.totalorder %s29, 2
    %s31 = scalar_select %p30, 0, %s29
    %s32 = sadd.s32 %s19, %s20
    %s33 = sadd.s32 %s31, %s27
    %s34 = ssub.s32 %s32, %s33
    %p35 = scmp.eq.s32.totalorder %s34, 0
    %s37 = sadd.s32 %s36, 1
    %s38 = scalar_select %p35, %s36, %s37
    %p41 = pneg %p35
    %p42 = scmp.eq.s32.totalorder %s12, 1
    %p43 = por %p41, %p42
    %p44 = scmp.ne.s32.totalorder %s36, %s39
    %p45 = scmp.eq.s32.totalorder %s12, 0
    %p46 = por %p44, %p45
    %p47 = scmp.ne.s32.totalorder %s36, %s39
    %p48 = scmp.eq.s32.totalorder %s17, 1
    %p49 = por %p47, %p48
    %p50 = scmp.ne.s32.totalorder %s39, %s40
    %p51 = scmp.eq.s32.totalorder %s17, 0
    %p52 = por %p50, %p51
    %p53 = scmp.ne.s32.totalorder %s39, %s40
    %p54 = scmp.eq.s32.totalorder %s18, 1
    %p55 = por %p53, %p54
    %p57 = scmp.ne.s32.totalorder %s40, %s56
    %p58 = scmp.eq.s32.totalorder %s18, 0
    %p59 = por %p57, %p58
    %s61 = sadd.s32 %s60, 1
    %p64 = scmp.eq.s32.totalorder %s12, 1
    %p65 = scmp.ne.s32.totalorder %s60, %s62
    %p66 = scmp.eq.s32.totalorder %s12, 0
    %p67 = por %p65, %p66
    %p68 = scmp.ne.s32.totalorder %s60, %s62
    %p69 = scmp.eq.s32.totalorder %s17, 1
    %p70 = por %p68, %p69
    %p71 = scmp.ne.s32.totalorder %s62, %s63
    %p72 = scmp.eq.s32.totalorder %s17, 0
    %p73 = por %p71, %p72
    %p74 = scmp.ne.s32.totalorder %s62, %s63
    %p75 = scmp.eq.s32.totalorder %s18, 1
    %p76 = por %p74, %p75
    %p78 = scmp.ne.s32.totalorder %s63, %s77
    %p79 = scmp.eq.s32.totalorder %s18, 0
    %p80 = por %p78, %p79
    %s81 = ssub.s32 %s20, %s27
    %p82 = scmp.eq.s32.totalorder %s81, 0
    %s84 = sadd.s32 %s83, 1
    %s85 = scalar_select %p82, %s83, %s84
    %p88 = pneg %p82
    %p89 = scmp.eq.s32.totalorder %s12, 1
    %p90 = por %p88, %p89
    %p91 = scmp.ne.s32.totalorder %s83, %s86
    %p92 = scmp.eq.s32.totalorder %s12, 0
    %p93 = por %p91, %p92
    %p94 = scmp.ne.s32.totalorder %s83, %s86
    %p95 = scmp.eq.s32.totalorder %s17, 1
    %p96 = por %p94, %p95
    %p97 = scmp.ne.s32.totalorder %s86, %s87
    %p98 = scmp.eq.s32.totalorder %s17, 0
    %p99 = por %p97, %p98
    %p100 = scmp.ne.s32.totalorder %s86, %s87
    %p101 = scmp.eq.s32.totalorder %s18, 1
    %p102 = por %p100, %p101
    %p104 = scmp.ne.s32.totalorder %s87, %s103
    %p105 = scmp.eq.s32.totalorder %s18, 0
    %p106 = por %p104, %p105
    %s107 = ssub.s32 %s19, %s31
    %s108 = ssub.s32 %s20, %s27
    %s109 = sor.u32 %s107, %s108
    %p110 = scmp.eq.s32.totalorder %s109, 0
    %s112 = sadd.s32 %s111, 1
    %s113 = scalar_select %p110, %s111, %s112
    %p116 = pneg %p110
    %p117 = scmp.eq.s32.totalorder %s12, 1
    %p118 = por %p116, %p117
    %p119 = scmp.ne.s32.totalorder %s111, %s114
    %p120 = scmp.eq.s32.totalorder %s12, 0
    %p121 = por %p119, %p120
    %p122 = scmp.ne.s32.totalorder %s111, %s114
    %p123 = scmp.eq.s32.totalorder %s17, 1
    %p124 = por %p122, %p123
    %p125 = scmp.ne.s32.totalorder %s114, %s115
    %p126 = scmp.eq.s32.totalorder %s17, 0
    %p127 = por %p125, %p126
    %p128 = scmp.ne.s32.totalorder %s114, %s115
    %p129 = scmp.eq.s32.totalorder %s18, 1
    %p130 = por %p128, %p129
    %p132 = scmp.ne.s32.totalorder %s115, %s131
    %p133 = scmp.eq.s32.totalorder %s18, 0
    %p134 = por %p132, %p133
    %s135 = ssub.s32 %s19, %s31
    %p136 = scmp.eq.s32.totalorder %s135, 0
    %s138 = sadd.s32 %s137, 1
    %s139 = scalar_select %p136, %s137, %s138
    %p142 = pneg %p136
    %p143 = scmp.eq.s32.totalorder %s12, 1
    %p144 = por %p142, %p143
    %p145 = scmp.ne.s32.totalorder %s137, %s140
    %p146 = scmp.eq.s32.totalorder %s12, 0
    %p147 = por %p145, %p146
    %p148 = scmp.ne.s32.totalorder %s137, %s140
    %p149 = scmp.eq.s32.totalorder %s17, 1
    %p150 = por %p148, %p149
    %p151 = scmp.ne.s32.totalorder %s140, %s141
    %p152 = scmp.eq.s32.totalorder %s17, 0
    %p153 = por %p151, %p152
    %p154 = scmp.ne.s32.totalorder %s140, %s141
    %p155 = scmp.eq.s32.totalorder %s18, 1
    %p156 = por %p154, %p155
    %p158 = scmp.ne.s32.totalorder %s141, %s157
    %p159 = scmp.eq.s32.totalorder %s18, 0
    %p160 = por %p158, %p159
    %s161 = ssub.s32 %s19, %s31
    %p162 = scmp.eq.s32.totalorder %s161, 0
    %s164 = sadd.s32 %s163, 1
    %s165 = scalar_select %p162, %s163, %s164
    %p168 = pneg %p162
    %p169 = scmp.eq.s32.totalorder %s12, 1
    %p170 = por %p168, %p169
    %p171 = scmp.ne.s32.totalorder %s163, %s166
    %p172 = scmp.eq.s32.totalorder %s12, 0
    %p173 = por %p171, %p172
    %p174 = scmp.ne.s32.totalorder %s163, %s166
    %p175 = scmp.eq.s32.totalorder %s17, 1
    %p176 = por %p174, %p175
    %p177 = scmp.ne.s32.totalorder %s166, %s167
    %p178 = scmp.eq.s32.totalorder %s17, 0
    %p179 = por %p177, %p178
    %p180 = scmp.ne.s32.totalorder %s166, %s167
    %p181 = scmp.eq.s32.totalorder %s18, 1
    %p182 = por %p180, %p181
    %p184 = scmp.ne.s32.totalorder %s167, %s183
    %p185 = scmp.eq.s32.totalorder %s18, 0
    %p186 = por %p184, %p185
    %p187 = scmp.le.s32.totalorder 1, %s12
    %p188 = scmp.lt.s32.totalorder %s12, 3
    %p189 = pnand %p187, %p188
    %p190 = pneg %p189
    // Predicated region
    $region9: #{decoder_block_forward.2} parent=5 // pred_check
      _
    $region10: #{decoder_block_forward.2} parent=5 // pred_check_branch
      %192 = sbr.rel (%p189) target = $region12
    $region11: #{decoder_block_forward.2} parent=5 // pred_region
      %s193 = ssub.s32 %s12, 1
      // Predicated region
      $region13: #{decoder_block_forward.2} parent=11 // pred_check
        %p194 = pneg %p73
      $region14: #{decoder_block_forward.2} parent=11 // pred_check_branch
        %196 = sbr.rel (%p194) target = $region16
      $region15: #{decoder_block_forward.2} parent=11 // pred_region
        _
      $region16: #{decoder_block_forward.2} parent=11 // pred_fallthru
        _
      // Predicated region
      $region17: #{decoder_block_forward.2} parent=11 // pred_check
        %p197 = pneg %p99
      $region18: #{decoder_block_forward.2} parent=11 // pred_check_branch
        %199 = sbr.rel (%p197) target = $region20
      $region19: #{decoder_block_forward.2} parent=11 // pred_region
        %s200 = smul.u32 3, %s22
        %p201 = scmp.lt.s32.totalorder %s200, 2
        %s202 = scalar_select %p201, %s200, 2
        %s203 = scalar_lea.vmem %s2, %s202
        %s204 = smul.u32 3, %s22
      $region20: #{decoder_block_forward.2} parent=11 // pred_fallthru
        _
    $region12: #{decoder_block_forward.2} parent=5 // pred_fallthru
      _
    %p205 = scmp.lt.s32.totalorder %s12, 2
    // Predicated region
    $region21: #{decoder_block_forward.2} parent=5 // pred_check
      %p206 = pneg %p205
    $region22: #{decoder_block_forward.2} parent=5 // pred_check_branch
      %208 = sbr.rel (%p206) target = $region24
    $region23: #{decoder_block_forward.2} parent=5 // pred_region
      // Predicated region
      $region25: #{decoder_block_forward.2} parent=23 // pred_check
        %p209 = pneg %p46
      $region26: #{decoder_block_forward.2} parent=23 // pred_check_branch
        %211 = sbr.rel (%p209) target = $region28
      $region27: #{decoder_block_forward.2} parent=23 // pred_region
        %s212 = sadd.s32 %s19, %s20
        %p213 = scmp.lt.s32.totalorder %s212, 1
        %s214 = scalar_select %p213, %s212, 1
        %s215 = smul.addr %s214, 8
        %s216 = smul.addr %s215, 4
        %s217 = scalar_lea.vmem %s0, %s216
        %s218 = sadd.s32 %s19, %s20
      $region28: #{decoder_block_forward.2} parent=23 // pred_fallthru
        _
    $region24: #{decoder_block_forward.2} parent=5 // pred_fallthru
      _
    %p219 = scmp.le.s32.totalorder 1, %s12
    %p220 = scmp.lt.s32.totalorder %s12, 3
    %p221 = pnand %p219, %p220
    %p222 = pneg %p221
    // Predicated region
    $region29: #{decoder_block_forward.2} parent=5 // pred_check
      _
    $region30: #{decoder_block_forward.2} parent=5 // pred_check_branch
      %224 = sbr.rel (%p221) target = $region32
    $region31: #{decoder_block_forward.2} parent=5 // pred_region
      %s225 = ssub.s32 %s12, 1
      %s226 = sadd.s32 %s21, %s22
      %p227 = scmp.lt.s32.totalorder %s226, 1
      %s228 = scalar_select %p227, %s226, 1
      %s229 = smul.addr %s228, 8
      %s230 = smul.addr %s229, 4
      %s231 = scalar_lea.vmem %s0, %s230
      %p232 = pneg %p52
      %p233 = pneg %p49
      %p234 = pneg %p73
      %p235 = pneg %p70
      %s236 = smul.u32 3, %s22
      %p237 = scmp.lt.s32.totalorder %s236, 2
      %s238 = scalar_select %p237, %s236, 2
      %s239 = scalar_lea.vmem %s2, %s238
      %p240 = pneg %p99
      %p241 = pneg %p96
      %p242 = pneg %p127
      %p243 = pneg %p124
      %s244 = smul.u32 3, %s22
      %p245 = scmp.lt.s32.totalorder %s21, 1
      %s246 = scalar_select %p245, %s21, 1
      %p247 = scmp.lt.s32.totalorder %s244, 2
      %s248 = scalar_select %p247, %s244, 2
      %s249 = smul.addr %s246, 3
      %s250 = sadd.s32 %s248, %s249
      %s251 = smul.addr %s250, 4
      %s252 = scalar_lea.vmem %s3, %s251
      %p253 = pneg %p153
      %p254 = pneg %p150
      %p255 = scmp.lt.s32.totalorder %s21, 1
      %s256 = scalar_select %p255, %s21, 1
      %s257 = smul.addr %s256, 8
      %s258 = scalar_lea.vmem %s4, %s257
      %p259 = pneg %p179
      %p260 = pneg %p176
      %p261 = scmp.lt.s32.totalorder %s21, 1
      %s262 = scalar_select %p261, %s21, 1
      %s263 = smul.addr %s262, 8
      %s264 = scalar_lea.vmem %s5, %s263
      %s265 = sadd.s32 %s21, %s22
      %p266 = scmp.lt.s32.totalorder %s265, 1
      %s267 = scalar_select %p266, %s265, 1
      %s268 = smul.addr %s267, 8
      %s269 = smul.addr %s268, 4
      %s270 = scalar_lea.vmem %s0, %s269
      %s271 = sadd.s32 %s21, %s22
      %s272 = smul.u32 3, %s22
      %p273 = scmp.lt.s32.totalorder %s272, 2
      %s274 = scalar_select %p273, %s272, 2
      %s275 = scalar_lea.vmem %s2, %s274
      %s276 = smul.u32 3, %s22
      %s277 = smul.u32 3, %s22
      %p278 = scmp.lt.s32.totalorder %s21, 1
      %s279 = scalar_select %p278, %s21, 1
      %p280 = scmp.lt.s32.totalorder %s277, 2
      %s281 = scalar_select %p280, %s277, 2
      %s282 = smul.addr %s279, 3
      %s283 = sadd.s32 %s281, %s282
      %s284 = smul.addr %s283, 4
      %s285 = scalar_lea.vmem %s3, %s284
      %s286 = smul.u32 3, %s22
      %p287 = scmp.lt.s32.totalorder %s21, 1
      %s288 = scalar_select %p287, %s21, 1
      %s289 = smul.addr %s288, 8
      %s290 = scalar_lea.vmem %s4, %s289
      %p291 = scmp.lt.s32.totalorder %s21, 1
      %s292 = scalar_select %p291, %s21, 1
      %s293 = smul.addr %s292, 8
      %s294 = scalar_lea.vmem %s5, %s293
      %v296 = vld [vmem:[%s270] sm:$0xff]
      %v297 = vld [vmem:[%s270 + $0x8] sm:$0xf]
      %v298 = vld [vmem:[%s270 + $0x10] sm:$0xff]
      %v299 = vld [vmem:[%s270 + $0x18] sm:$0xf]
      %v304 = vunpack.c.l.b16 %v296
      %v305 = vunpack.c.h.b16 %v296
      %v306 = vunpack.c.l.b16 %v297
      %v307 = vunpack.c.l.b16 %v298
      %v308 = vunpack.c.h.b16 %v298
      %v309 = vunpack.c.l.b16 %v299
      %v310 = vpack.c.b16 %v307, %v304
      %v311 = vpack.c.b16 %v308, %v305
      %v312 = vpack.c.b16 %v309, %v306
      %316 = vst [vmem:[#allocation2] sm:$0xff] %v310
      %317 = vst [vmem:[#allocation2 + $0x8] sm:$0xff] %v311
      %318 = vst [vmem:[#allocation2 + $0x10] sm:$0xff] %v312
      %v319 = vld [vmem:[%s270] sm:$0xff]
      %v320 = vld [vmem:[%s270 + $0x8] sm:$0xff]
      %v321 = vld [vmem:[%s270 + $0x10] sm:$0xff]
      %v322 = vld [vmem:[%s270 + $0x18] sm:$0xff]
      %v327 = vunpack.c.l.b16 %v319
      %v328 = vunpack.c.h.b16 %v319
      %v329 = vunpack.c.l.b16 %v320
      %v330 = vunpack.c.h.b16 %v320
      %v331 = vunpack.c.l.b16 %v321
      %v332 = vunpack.c.h.b16 %v321
      %v333 = vunpack.c.l.b16 %v322
      %v334 = vunpack.c.h.b16 %v322
      %v335 = vpack.c.b16 %v331, %v327
      %v336 = vpack.c.b16 %v332, %v328
      %v337 = vpack.c.b16 %v333, %v329
      %v338 = vpack.c.b16 %v334, %v330
      %339 = vrot.lane.b32.xlu0 %v335, 127
      %v340 = vpop.permute.xlu0 %339
      %341 = vrot.lane.b32.xlu0 %v336, 127
      %v342 = vpop.permute.xlu0 %341
      %343 = vrot.lane.b32.xlu0 %v337, 127
      %v344 = vpop.permute.xlu0 %343
      %345 = vrot.lane.b32.xlu0 %v338, 127
      %v346 = vpop.permute.xlu0 %345
      %vm347 = vcmask 1039360
      %v348 = vsel %vm347, %v340, %v342
      %v349 = vsel %vm347, %v342, %v344
      %v350 = vsel %vm347, %v344, %v346
      %354 = vst [vmem:[#allocation2 + $0x18] sm:$0xff] %v348
      %355 = vst [vmem:[#allocation2 + $0x20] sm:$0xff] %v349
      %356 = vst [vmem:[#allocation2 + $0x28] sm:$0xff] %v350
      %v357 = vld [vmem:[%s270] sm:$0xff]
      %v358 = vld [vmem:[%s270 + $0x8] sm:$0xff]
      %v359 = vld [vmem:[%s270 + $0x10] sm:$0xff]
      %v360 = vld [vmem:[%s270 + $0x18] sm:$0xff]
      %v365 = vunpack.c.l.b16 %v357
      %v366 = vunpack.c.h.b16 %v357
      %v367 = vunpack.c.l.b16 %v358
      %v368 = vunpack.c.h.b16 %v358
      %v369 = vunpack.c.l.b16 %v359
      %v370 = vunpack.c.h.b16 %v359
      %v371 = vunpack.c.l.b16 %v360
      %v372 = vunpack.c.h.b16 %v360
      %v373 = vpack.c.b16 %v369, %v365
      %v374 = vpack.c.b16 %v370, %v366
      %v375 = vpack.c.b16 %v371, %v367
      %v376 = vpack.c.b16 %v372, %v368
      %377 = vrot.lane.b32.xlu0 %v373, 126
      %v378 = vpop.permute.xlu0 %377
      %379 = vrot.lane.b32.xlu0 %v374, 126
      %v380 = vpop.permute.xlu0 %379
      %381 = vrot.lane.b32.xlu0 %v375, 126
      %v382 = vpop.permute.xlu0 %381
      %383 = vrot.lane.b32.xlu0 %v376, 126
      %v384 = vpop.permute.xlu0 %383
      %vm385 = vcmask 1031168
      %v386 = vsel %vm385, %v378, %v380
      %v387 = vsel %vm385, %v380, %v382
      %v388 = vsel %vm385, %v382, %v384
      %392 = vst [vmem:[#allocation2 + $0x30] sm:$0xff] %v386
      %393 = vst [vmem:[#allocation2 + $0x38] sm:$0xff] %v387
      %394 = vst [vmem:[#allocation2 + $0x40] sm:$0xff] %v388
      %v395 = vld [vmem:[%s270] sm:$0xff]
      %v396 = vld [vmem:[%s270 + $0x8] sm:$0xff]
      %v397 = vld [vmem:[%s270 + $0x10] sm:$0xff]
      %v398 = vld [vmem:[%s270 + $0x18] sm:$0xff]
      %v403 = vunpack.c.l.b16 %v395
      %v404 = vunpack.c.h.b16 %v395
      %v405 = vunpack.c.l.b16 %v396
      %v406 = vunpack.c.h.b16 %v396
      %v407 = vunpack.c.l.b16 %v397
      %v408 = vunpack.c.h.b16 %v397
      %v409 = vunpack.c.l.b16 %v398
      %v410 = vunpack.c.h.b16 %v398
      %v411 = vpack.c.b16 %v407, %v403
      %v412 = vpack.c.b16 %v408, %v404
      %v413 = vpack.c.b16 %v409, %v405
      %v414 = vpack.c.b16 %v410, %v406
      %415 = vrot.lane.b32.xlu0 %v411, 110
      %v416 = vpop.permute.xlu0 %415
      %417 = vrot.lane.b32.xlu0 %v412, 110
      %v418 = vpop.permute.xlu0 %417
      %419 = vrot.lane.b32.xlu0 %v413, 110
      %v420 = vpop.permute.xlu0 %419
      %421 = vrot.lane.b32.xlu0 %v414, 110
      %v422 = vpop.permute.xlu0 %421
      %vm423 = vcmask 900096
      %v424 = vsel %vm423, %v416, %v418
      %v425 = vsel %vm423, %v418, %v420
      %v426 = vsel %vm423, %v420, %v422
      %430 = vst [vmem:[#allocation2 + $0x48] sm:$0xff] %v424
      %431 = vst [vmem:[#allocation2 + $0x50] sm:$0xff] %v425
      %432 = vst [vmem:[#allocation2 + $0x58] sm:$0xff] %v426
      %v433 = vld [vmem:[%s270] sm:$0xff]
      %v434 = vld [vmem:[%s270 + $0x8] sm:$0xff]
      %v435 = vld [vmem:[%s270 + $0x10] sm:$0xff]
      %v436 = vld [vmem:[%s270 + $0x18] sm:$0xff]
      %v441 = vunpack.c.l.b16 %v433
      %v442 = vunpack.c.h.b16 %v433
      %v443 = vunpack.c.l.b16 %v434
      %v444 = vunpack.c.h.b16 %v434
      %v445 = vunpack.c.l.b16 %v435
      %v446 = vunpack.c.h.b16 %v435
      %v447 = vunpack.c.l.b16 %v436
      %v448 = vunpack.c.h.b16 %v436
      %v449 = vpack.c.b16 %v445, %v441
      %v450 = vpack.c.b16 %v446, %v442
      %v451 = vpack.c.b16 %v447, %v443
      %v452 = vpack.c.b16 %v448, %v444
      %453 = vrot.lane.b32.xlu0 %v449, 109
      %v454 = vpop.permute.xlu0 %453
      %455 = vrot.lane.b32.xlu0 %v450, 109
      %v456 = vpop.permute.xlu0 %455
      %457 = vrot.lane.b32.xlu0 %v451, 109
      %v458 = vpop.permute.xlu0 %457
      %459 = vrot.lane.b32.xlu0 %v452, 109
      %v460 = vpop.permute.xlu0 %459
      %vm461 = vcmask 891904
      %v462 = vsel %vm461, %v454, %v456
      %v463 = vsel %vm461, %v456, %v458
      %v464 = vsel %vm461, %v458, %v460
      %468 = vst [vmem:[#allocation2 + $0x60] sm:$0xff] %v462
      %469 = vst [vmem:[#allocation2 + $0x68] sm:$0xff] %v463
      %470 = vst [vmem:[#allocation2 + $0x70] sm:$0xff] %v464
      %v471 = vld [vmem:[%s270] sm:$0xff]
      %v472 = vld [vmem:[%s270 + $0x8] sm:$0xff]
      %v473 = vld [vmem:[%s270 + $0x10] sm:$0xff]
      %v474 = vld [vmem:[%s270 + $0x18] sm:$0xff]
      %v479 = vunpack.c.l.b16 %v471
      %v480 = vunpack.c.h.b16 %v471
      %v481 = vunpack.c.l.b16 %v472
      %v482 = vunpack.c.h.b16 %v472
      %v483 = vunpack.c.l.b16 %v473
      %v484 = vunpack.c.h.b16 %v473
      %v485 = vunpack.c.l.b16 %v474
      %v486 = vunpack.c.h.b16 %v474
      %v487 = vpack.c.b16 %v483, %v479
      %v488 = vpack.c.b16 %v484, %v480
      %v489 = vpack.c.b16 %v485, %v481
      %v490 = vpack.c.b16 %v486, %v482
      %491 = vrot.lane.b32.xlu0 %v487, 108
      %v492 = vpop.permute.xlu0 %491
      %493 = vrot.lane.b32.xlu0 %v488, 108
      %v494 = vpop.permute.xlu0 %493
      %495 = vrot.lane.b32.xlu0 %v489, 108
      %v496 = vpop.permute.xlu0 %495
      %497 = vrot.lane.b32.xlu0 %v490, 108
      %v498 = vpop.permute.xlu0 %497
      %vm499 = vcmask 883712
      %v500 = vsel %vm499, %v492, %v494
      %v501 = vsel %vm499, %v494, %v496
      %v502 = vsel %vm499, %v496, %v498
      %506 = vst [vmem:[#allocation2 + $0x78] sm:$0xff] %v500
      %507 = vst [vmem:[#allocation2 + $0x80] sm:$0xff] %v501
      %508 = vst [vmem:[#allocation2 + $0x88] sm:$0xff] %v502
      %v509 = vld [vmem:[%s270] sm:$0xff]
      %v510 = vld [vmem:[%s270 + $0x8] sm:$0xff]
      %v511 = vld [vmem:[%s270 + $0x10] sm:$0xff]
      %v512 = vld [vmem:[%s270 + $0x18] sm:$0xff]
      %v517 = vunpack.c.l.b16 %v509
      %v518 = vunpack.c.h.b16 %v509
      %v519 = vunpack.c.l.b16 %v510
      %v520 = vunpack.c.h.b16 %v510
      %v521 = vunpack.c.l.b16 %v511
      %v522 = vunpack.c.h.b16 %v511
      %v523 = vunpack.c.l.b16 %v512
      %v524 = vunpack.c.h.b16 %v512
      %v525 = vpack.c.b16 %v521, %v517
      %v526 = vpack.c.b16 %v522, %v518
      %v527 = vpack.c.b16 %v523, %v519
      %v528 = vpack.c.b16 %v524, %v520
      %529 = vrot.lane.b32.xlu0 %v525, 92
      %v530 = vpop.permute.xlu0 %529
      %531 = vrot.lane.b32.xlu0 %v526, 92
      %v532 = vpop.permute.xlu0 %531
      %533 = vrot.lane.b32.xlu0 %v527, 92
      %v534 = vpop.permute.xlu0 %533
      %535 = vrot.lane.b32.xlu0 %v528, 92
      %v536 = vpop.permute.xlu0 %535
      %vm537 = vcmask 752640
      %v538 = vsel %vm537, %v530, %v532
      %v539 = vsel %vm537, %v532, %v534
      %v540 = vsel %vm537, %v534, %v536
      %544 = vst [vmem:[#allocation2 + $0x90] sm:$0xff] %v538
      %545 = vst [vmem:[#allocation2 + $0x98] sm:$0xff] %v539
      %546 = vst [vmem:[#allocation2 + $0xa0] sm:$0xff] %v540
      %v547 = vld [vmem:[%s270] sm:$0xff]
      %v548 = vld [vmem:[%s270 + $0x8] sm:$0xff]
      %v549 = vld [vmem:[%s270 + $0x10] sm:$0xff]
      %v550 = vld [vmem:[%s270 + $0x18] sm:$0xff]
      %v555 = vunpack.c.l.b16 %v547
      %v556 = vunpack.c.h.b16 %v547
      %v557 = vunpack.c.l.b16 %v548
      %v558 = vunpack.c.h.b16 %v548
      %v559 = vunpack.c.l.b16 %v549
      %v560 = vunpack.c.h.b16 %v549
      %v561 = vunpack.c.l.b16 %v550
      %v562 = vunpack.c.h.b16 %v550
      %v563 = vpack.c.b16 %v559, %v555
      %v564 = vpack.c.b16 %v560, %v556
      %v565 = vpack.c.b16 %v561, %v557
      %v566 = vpack.c.b16 %v562, %v558
      %567 = vrot.lane.b32.xlu0 %v563, 91
      %v568 = vpop.permute.xlu0 %567
      %569 = vrot.lane.b32.xlu0 %v564, 91
      %v570 = vpop.permute.xlu0 %569
      %571 = vrot.lane.b32.xlu0 %v565, 91
      %v572 = vpop.permute.xlu0 %571
      %573 = vrot.lane.b32.xlu0 %v566, 91
      %v574 = vpop.permute.xlu0 %573
      %vm575 = vcmask 744448
      %v576 = vsel %vm575, %v568, %v570
      %v577 = vsel %vm575, %v570, %v572
      %v578 = vsel %vm575, %v572, %v574
      %582 = vst [vmem:[#allocation2 + $0xa8] sm:$0xff] %v576
      %583 = vst [vmem:[#allocation2 + $0xb0] sm:$0xff] %v577
      %584 = vst [vmem:[#allocation2 + $0xb8] sm:$0xff] %v578
      %v585 = vld [vmem:[%s270] sm:$0xff]
      %v586 = vld [vmem:[%s270 + $0x8] sm:$0xff]
      %v587 = vld [vmem:[%s270 + $0x10] sm:$0xff]
      %v588 = vld [vmem:[%s270 + $0x18] sm:$0xff]
      %v593 = vunpack.c.l.b16 %v585
      %v594 = vunpack.c.h.b16 %v585
      %v595 = vunpack.c.l.b16 %v586
      %v596 = vunpack.c.h.b16 %v586
      %v597 = vunpack.c.l.b16 %v587
      %v598 = vunpack.c.h.b16 %v587
      %v599 = vunpack.c.l.b16 %v588
      %v600 = vunpack.c.h.b16 %v588
      %v601 = vpack.c.b16 %v597, %v593
      %v602 = vpack.c.b16 %v598, %v594
      %v603 = vpack.c.b16 %v599, %v595
      %v604 = vpack.c.b16 %v600, %v596
      %605 = vrot.lane.b32.xlu0 %v601, 90
      %v606 = vpop.permute.xlu0 %605
      %607 = vrot.lane.b32.xlu0 %v602, 90
      %v608 = vpop.permute.xlu0 %607
      %609 = vrot.lane.b32.xlu0 %v603, 90
      %v610 = vpop.permute.xlu0 %609
      %611 = vrot.lane.b32.xlu0 %v604, 90
      %v612 = vpop.permute.xlu0 %611
      %vm613 = vcmask 736256
      %v614 = vsel %vm613, %v606, %v608
      %v615 = vsel %vm613, %v608, %v610
      %v616 = vsel %vm613, %v610, %v612
      %620 = vst [vmem:[#allocation2 + $0xc0] sm:$0xff] %v614
      %621 = vst [vmem:[#allocation2 + $0xc8] sm:$0xff] %v615
      %622 = vst [vmem:[#allocation2 + $0xd0] sm:$0xff] %v616
      %v623 = vld [vmem:[%s1] sm:$0xff]
      %v624 = vld [vmem:[#allocation2] sm:$0xff]
      %v625 = vld [vmem:[#allocation2 + $0x8] sm:$0xff]
      %v626 = vld [vmem:[#allocation2 + $0x10] sm:$0xff]
      %v627 = vld [vmem:[#allocation2 + $0x18] sm:$0xff]
      %v628 = vld [vmem:[#allocation2 + $0x20] sm:$0xff]
      %v629 = vld [vmem:[#allocation2 + $0x28] sm:$0xff]
      %v630 = vld [vmem:[#allocation2 + $0x30] sm:$0xff]
      %v631 = vld [vmem:[#allocation2 + $0x38] sm:$0xff]
      %v632 = vld [vmem:[#allocation2 + $0x40] sm:$0xff]
      %v633 = vld [vmem:[#allocation2 + $0x48] sm:$0xff]
      %v634 = vld [vmem:[#allocation2 + $0x50] sm:$0xff]
      %v635 = vld [vmem:[#allocation2 + $0x58] sm:$0xff]
      %v636 = vld [vmem:[#allocation2 + $0x60] sm:$0xff]
      %v637 = vld [vmem:[#allocation2 + $0x68] sm:$0xff]
      %v638 = vld [vmem:[#allocation2 + $0x70] sm:$0xff]
      %v639 = vld [vmem:[#allocation2 + $0x78] sm:$0xff]
      %v640 = vld [vmem:[#allocation2 + $0x80] sm:$0xff]
      %v641 = vld [vmem:[#allocation2 + $0x88] sm:$0xff]
      %v642 = vld [vmem:[#allocation2 + $0x90] sm:$0xff]
      %v643 = vld [vmem:[#allocation2 + $0x98] sm:$0xff]
      %v644 = vld [vmem:[#allocation2 + $0xa0] sm:$0xff]
      %v645 = vld [vmem:[#allocation2 + $0xa8] sm:$0xff]
      %v646 = vld [vmem:[#allocation2 + $0xb0] sm:$0xff]
      %v647 = vld [vmem:[#allocation2 + $0xb8] sm:$0xff]
      %v648 = vld [vmem:[#allocation2 + $0xc0] sm:$0xff]
      %v649 = vld [vmem:[#allocation2 + $0xc8] sm:$0xff]
      %v650 = vld [vmem:[#allocation2 + $0xd0] sm:$0xff]
      %v652 = vunpack.c.l.b16 %v623
      %v653 = vunpack.c.h.b16 %v623
      %v654 = vpack.c.b16 %v652, %v652
      %v655 = vpack.c.b16 %v653, %v653
      %vm657 = vcmask 130048
      %v659 = vsel %vm657, %v655, 0
      %661 = vmatprep.subr.bf16.mxu0 %v625
      %662 = vmatpush1.bf16.msra.mxu0 %v624
      %663 = vmatprep.subr.bf16.mxu0 %v628
      %664 = vmatpush1.bf16.msra.mxu0 %v627
      %665 = vmatprep.subr.bf16.mxu0 %v631
      %666 = vmatpush1.bf16.msra.mxu0 %v630
      %667 = vmatprep.subr.bf16.mxu0 %v634
      %668 = vmatpush1.bf16.msra.mxu0 %v633
      %669 = vmatprep.subr.bf16.mxu0 %v637
      %670 = vmatpush1.bf16.msra.mxu0 %v636
      %671 = vmatprep.subr.bf16.mxu0 %v640
      %672 = vmatpush1.bf16.msra.mxu0 %v639
      %673 = vmatprep.subr.bf16.mxu0 %v643
      %674 = vmatpush1.bf16.msra.mxu0 %v642
      %675 = vmatprep.subr.bf16.mxu0 %v646
      %676 = vmatpush1.bf16.msra.mxu0 %v645
      %677 = vmatprep.subr.bf16.mxu0 %v649
      %678 = vmatpush1.bf16.msra.mxu0 %v648
      %679 = vmatprep.subr.bf16.mxu0 0
      %680 = vmatpush1.bf16.msra.mxu0 0
      %681 = vmatprep.subr.bf16.mxu0 0
      %682 = vmatpush1.bf16.msra.mxu0 0
      %683 = vmatprep.subr.bf16.mxu0 0
      %684 = vmatpush1.bf16.msra.mxu0 0
      %685 = vmatprep.subr.bf16.mxu0 0
      %686 = vmatpush1.bf16.msra.mxu0 0
      %687 = vmatprep.subr.bf16.mxu0 0
      %688 = vmatpush1.bf16.msra.mxu0 0
      %689 = vmatprep.subr.bf16.mxu0 0
      %690 = vmatpush1.bf16.msra.mxu0 0
      %691 = vmatprep.subr.bf16.mxu0 0
      %692 = vmatpush1.bf16.msra.mxu0 0
      %693 = vmatprep.mubr.bf16.mxu0 %v659
      %694 = vmatmul.mubr.bf16.gmra.mrb[0].mxu0 %v654
      %v695 = vpop.f32.mrb[0].mxu0
      %v696 = vadd.f32 0.0, %v695
      %v697 = vpop.f32.mrb[0].mxu0
      %v698 = vadd.f32 0.0, %v697
      %v699 = vpop.f32.mrb[0].mxu0
      %v700 = vpop.f32.mrb[0].mxu0
      %701 = vdwg.mxu0
      %702 = vmatprep.subr.bf16.mxu0 0
      %703 = vmatpush1.bf16.msra.mxu0 %v626
      %704 = vmatprep.subr.bf16.mxu0 0
      %705 = vmatpush1.bf16.msra.mxu0 %v629
      %706 = vmatprep.subr.bf16.mxu0 0
      %707 = vmatpush1.bf16.msra.mxu0 %v632
      %708 = vmatprep.subr.bf16.mxu0 0
      %709 = vmatpush1.bf16.msra.mxu0 %v635
      %710 = vmatprep.subr.bf16.mxu0 0
      %711 = vmatpush1.bf16.msra.mxu0 %v638
      %712 = vmatprep.subr.bf16.mxu0 0
      %713 = vmatpush1.bf16.msra.mxu0 %v641
      %714 = vmatprep.subr.bf16.mxu0 0
      %715 = vmatpush1.bf16.msra.mxu0 %v644
      %716 = vmatprep.subr.bf16.mxu0 0
      %717 = vmatpush1.bf16.msra.mxu0 %v647
      %718 = vmatprep.subr.bf16.mxu0 0
      %719 = vmatpush1.bf16.msra.mxu0 %v650
      %720 = vmatprep.subr.bf16.mxu0 0
      %721 = vmatpush1.bf16.msra.mxu0 0
      %722 = vmatprep.subr.bf16.mxu0 0
      %723 = vmatpush1.bf16.msra.mxu0 0
      %724 = vmatprep.subr.bf16.mxu0 0
      %725 = vmatpush1.bf16.msra.mxu0 0
      %726 = vmatprep.subr.bf16.mxu0 0
      %727 = vmatpush1.bf16.msra.mxu0 0
      %728 = vmatprep.subr.bf16.mxu0 0
      %729 = vmatpush1.bf16.msra.mxu0 0
      %730 = vmatprep.subr.bf16.mxu0 0
      %731 = vmatpush1.bf16.msra.mxu0 0
      %732 = vmatprep.subr.bf16.mxu0 0
      %733 = vmatpush1.bf16.msra.mxu0 0
      %734 = vmatprep.mubr.bf16.mxu0 %v659
      %735 = vmatmul.mubr.bf16.gmra.mrb[0].mxu0 %v654
      %v736 = vpop.f32.mrb[0].mxu0
      %v737 = vadd.f32 0.0, %v736
      %v738 = vpop.f32.mrb[0].mxu0
      %v739 = vpop.f32.mrb[0].mxu0
      %v740 = vpop.f32.mrb[0].mxu0
      %741 = vdwg.mxu0
      %v742 = vpack.c.bf16 %v696, %v696
      %v743 = vpack.c.bf16 %v698, %v698
      %v744 = vpack.c.bf16 %v737, %v737
      %v748 = vunpack.c.l.b16 %v742
      %v749 = vunpack.c.l.b16 %v743
      %v750 = vunpack.c.l.b16 %v744
      %v751 = vpack.c.b16 %v749, %v748
      %v752 = vpack.c.b16 %v750, %v750
      %755 = vst [vmem:[%s285] sm:$0xff] %v751
      %756 = vst [vmem:[%s285 + $0x8] sm:$0xf] %v752
      %v757 = vld [vmem:[%s275] sm:$0x7]
      %v759 = vlaneseq
      %v760 = vshrl.u32 %v759, 7
      %v761 = vsub.s32 0, %v760
      %v762 = vrot.slane %v757, %v761
      %v763 = vlaneseq
      %v764 = vshrl.u32 %v763, 7
      %v765 = vsub.s32 1, %v764
      %v766 = vrot.slane %v757, %v765
      %v767 = vlaneseq
      %v768 = vshrl.u32 %v767, 7
      %v769 = vsub.s32 2, %v768
      %v770 = vrot.slane %v757, %v769
      %v774 = vmul.f32 %v696, %v762
      %v775 = vmul.f32 %v698, %v766
      %v776 = vmul.f32 %v737, %v770
      %p777 = scmp.eq.s32.totalorder %s22, 0
      // Predicated region
      $region33: #{decoder_block_forward.2} parent=31 // pred_check
        %p778 = pneg %p777
      $region34: #{decoder_block_forward.2} parent=31 // pred_check_branch
        %780 = sbr.rel (%p778) target = $region36
      $region35: #{decoder_block_forward.2} parent=31 // pred_region
        %vm781 = vcmask 7168
        %782 = vst.msk [vmem:[%s290] sm:$0xff] %vm781, 0.0
        %783 = vst.msk [vmem:[%s294] sm:$0xff] %vm781, 0.0
      $region36: #{decoder_block_forward.2} parent=31 // pred_fallthru
        _
      %v784 = vld [vmem:[%s290] sm:$0xff]
      %v785 = vadd.f32 %v774, %v775
      %v786 = vadd.f32 %v785, %v776
      %787 = vadd.xlane.f32.xlu0 %v786
      %v788 = vpop.xlane.xlu0 %787
      %v789 = vadd.f32 %v784, %v788
      %vm790 = vcmask 7168
      %791 = vst.msk [vmem:[%s290] sm:$0xff] %vm790, %v789
      %v792 = vld [vmem:[%s294] sm:$0xff]
      %v793 = vmul.f32 %v774, %v696
      %v794 = vmul.f32 %v775, %v698
      %v795 = vmul.f32 %v776, %v737
      %v796 = vadd.f32 %v793, %v794
      %v797 = vadd.f32 %v796, %v795
      %798 = vadd.xlane.f32.xlu0 %v797
      %v799 = vpop.xlane.xlu0 %798
      %v800 = vadd.f32 %v792, %v799
      %801 = vst.msk [vmem:[%s294] sm:$0xff] %vm790, %v800
      %s802 = smul.u32 3, %s22
      %p803 = scmp.lt.s32.totalorder %s21, 1
      %s804 = scalar_select %p803, %s21, 1
      %p805 = scmp.lt.s32.totalorder %s802, 2
      %s806 = scalar_select %p805, %s802, 2
      %s807 = smul.addr %s804, 3
      %s808 = sadd.s32 %s806, %s807
      %s809 = smul.addr %s808, 4
      %s810 = scalar_lea.vmem %s3, %s809
      %p811 = scmp.lt.s32.totalorder %s21, 1
      %s812 = scalar_select %p811, %s21, 1
      %s813 = smul.addr %s812, 8
      %s814 = scalar_lea.vmem %s4, %s813
      %p815 = scmp.lt.s32.totalorder %s21, 1
      %s816 = scalar_select %p815, %s21, 1
      %s817 = smul.addr %s816, 8
      %s818 = scalar_lea.vmem %s5, %s817
      // Predicated region
      $region37: #{decoder_block_forward.2} parent=31 // pred_check
        %p819 = pneg %p124
      $region38: #{decoder_block_forward.2} parent=31 // pred_check_branch
        %821 = sbr.rel (%p819) target = $region40
      $region39: #{decoder_block_forward.2} parent=31 // pred_region
        %s822 = smul.u32 3, %s22
      $region40: #{decoder_block_forward.2} parent=31 // pred_fallthru
        _
      // Predicated region
      $region41: #{decoder_block_forward.2} parent=31 // pred_check
        %p823 = pneg %p150
      $region42: #{decoder_block_forward.2} parent=31 // pred_check_branch
        %825 = sbr.rel (%p823) target = $region44
      $region43: #{decoder_block_forward.2} parent=31 // pred_region
        _
      $region44: #{decoder_block_forward.2} parent=31 // pred_fallthru
        _
      // Predicated region
      $region45: #{decoder_block_forward.2} parent=31 // pred_check
        %p826 = pneg %p176
      $region46: #{decoder_block_forward.2} parent=31 // pred_check_branch
        %828 = sbr.rel (%p826) target = $region48
      $region47: #{decoder_block_forward.2} parent=31 // pred_region
        _
      $region48: #{decoder_block_forward.2} parent=31 // pred_fallthru
        _
    $region32: #{decoder_block_forward.2} parent=5 // pred_fallthru
      _
    %p829 = scmp.le.s32.totalorder 2, %s12
    // Predicated region
    $region49: #{decoder_block_forward.2} parent=5 // pred_check
      %p830 = pneg %p829
    $region50: #{decoder_block_forward.2} parent=5 // pred_check_branch
      %832 = sbr.rel (%p830) target = $region52
    $region51: #{decoder_block_forward.2} parent=5 // pred_region
      %s833 = ssub.s32 %s12, 2
      // Predicated region
      $region53: #{decoder_block_forward.2} parent=51 // pred_check
        %p834 = pneg %p130
      $region54: #{decoder_block_forward.2} parent=51 // pred_check_branch
        %836 = sbr.rel (%p834) target = $region56
      $region55: #{decoder_block_forward.2} parent=51 // pred_region
        %s837 = smul.u32 3, %s24
        %p838 = scmp.lt.s32.totalorder %s23, 1
        %s839 = scalar_select %p838, %s23, 1
        %p840 = scmp.lt.s32.totalorder %s837, 2
        %s841 = scalar_select %p840, %s837, 2
        %s842 = smul.addr %s839, 3
        %s843 = sadd.s32 %s841, %s842
        %s844 = smul.addr %s843, 4
        %s845 = scalar_lea.vmem %s3, %s844
      $region56: #{decoder_block_forward.2} parent=51 // pred_fallthru
        _
      // Predicated region
      $region57: #{decoder_block_forward.2} parent=51 // pred_check
        %p846 = pneg %p156
      $region58: #{decoder_block_forward.2} parent=51 // pred_check_branch
        %848 = sbr.rel (%p846) target = $region60
      $region59: #{decoder_block_forward.2} parent=51 // pred_region
        %p849 = scmp.lt.s32.totalorder %s23, 1
        %s850 = scalar_select %p849, %s23, 1
        %s851 = smul.addr %s850, 8
        %s852 = scalar_lea.vmem %s4, %s851
      $region60: #{decoder_block_forward.2} parent=51 // pred_fallthru
        _
      // Predicated region
      $region61: #{decoder_block_forward.2} parent=51 // pred_check
        %p853 = pneg %p182
      $region62: #{decoder_block_forward.2} parent=51 // pred_check_branch
        %855 = sbr.rel (%p853) target = $region64
      $region63: #{decoder_block_forward.2} parent=51 // pred_region
        %p856 = scmp.lt.s32.totalorder %s23, 1
        %s857 = scalar_select %p856, %s23, 1
        %s858 = smul.addr %s857, 8
        %s859 = scalar_lea.vmem %s5, %s858
      $region64: #{decoder_block_forward.2} parent=51 // pred_fallthru
        _
    $region52: #{decoder_block_forward.2} parent=5 // pred_fallthru
      _
  $region6: #{decoder_block_forward.2} parent=0 // loop_footer
    %s16 = sadd.s32 1, %s12
  $region7: #{decoder_block_forward.2} parent=0 // loop_footer_branch
    %11 = sbr.rel target = $region3
  $region8: #{decoder_block_forward.2} parent=0 // loop_exit
    _

</llo_original>
